<compile_context>
chip_gen: v5e
topology: v5e:2x2
jax: 0.10.0
libtpu: 0.0.40
codegen_flags: <defaults>
</compile_context>

<pallas_src>
import jax
import jax.numpy as jnp
from jax import lax
from jax.experimental import pallas as pl
from jax.experimental.pallas import tpu as pltpu


def _round_up(x, m):
    return ((x + m - 1) // m) * m


def _make_attention_kernel(return_weights, lc_valid, lc_padded, matmul_dtype):
    needs_mask = lc_valid < lc_padded

    def kernel(q_ref, c_ref, win_t_ref, wout_mix_t_ref, wout_q_t_ref, out_ref, *w_refs):
        # q_ref:           (bb, tq, d)   query tile (original dtype; cast in-kernel)
        # c_ref:           (bb, lc, d)   context tile (original dtype; cast in-kernel)
        # win_t_ref:       (d, d)        W_in^T               (matmul dtype)
        # wout_mix_t_ref:  (d, d)        W_out[:, :D]^T (mix half, padded)
        # wout_q_t_ref:    (d, d)        W_out[:, D:]^T (q' half, padded)
        # out_ref:         (bb, tq, d)
        # w_refs[0]:       (bb, tq, lc)  attention weights, only if return_weights
        bb, tq, d = q_ref.shape
        q = q_ref[...].astype(matmul_dtype)      # (bb, tq, d)
        c = c_ref[...].astype(matmul_dtype)      # (bb, lc, d)

        # linear_in on the merged (bb*tq, d) slab for MXU occupancy. tq is a multiple
        # of 16 and d a multiple of 128 so the reshape is layout-free (no VMEM copy).
        q_flat = q.reshape(bb * tq, d)
        qp_flat = jnp.dot(q_flat, win_t_ref[...],
                          preferred_element_type=jnp.float32)          # (bb*tq, d) f32
        qp = qp_flat.reshape(bb, tq, d)

        # attention scores: per-batch q' @ context^T (f32 accumulation).
        scores = jnp.einsum("bqd,bkd->bqk", qp.astype(matmul_dtype), c,
                            preferred_element_type=jnp.float32)         # (bb, tq, lc)
        if needs_mask:
            # Lane-padded context columns must not participate in the softmax.
            col = lax.broadcasted_iota(jnp.int32, scores.shape, 2)
            scores = jnp.where(col < lc_valid, scores, -jnp.inf)

        m = jnp.max(scores, axis=-1, keepdims=True)
        e = jnp.exp(scores - m)
        denom = jnp.sum(e, axis=-1, keepdims=True)

        if return_weights:
            # Exact normalization: these weights are returned to the caller.
            weights = e * pl.reciprocal(denom)                           # (bb,tq,lc) f32
            mix = jnp.einsum("bqk,bkd->bqd", weights.astype(matmul_dtype), c,
                             preferred_element_type=jnp.float32)         # (bb,tq,d) f32
            w_refs[0][...] = weights.astype(w_refs[0].dtype)
        else:
            # Normalize AFTER the mix matmul: (bb,tq,d) multiply instead of (bb,tq,lc);
            # approx reciprocal runs on the otherwise-idle EUP.
            mix = jnp.einsum("bqk,bkd->bqd", e.astype(matmul_dtype), c,
                             preferred_element_type=jnp.float32)
            mix = mix * pl.reciprocal(denom, approx=True)

        # output = tanh([mix, q'] @ W_out^T), W_out split into its two D-column halves
        # so no lane-axis concatenate (VMEM relayout) is materialized.
        mix_flat = mix.reshape(bb * tq, d)
        out_flat = (
            jnp.dot(mix_flat.astype(matmul_dtype), wout_mix_t_ref[...],
                    preferred_element_type=jnp.float32)
            + jnp.dot(qp_flat.astype(matmul_dtype), wout_q_t_ref[...],
                      preferred_element_type=jnp.float32)
        )
        out_ref[...] = jnp.tanh(out_flat).reshape(bb, tq, d).astype(out_ref.dtype)

    return kernel


def _vmem_policy():
    """(vmem_capacity, vmem_limit_bytes, block_budget_bytes, block_q_cap)."""
    vmem_cap = 64 * 1024 * 1024
    try:
        vmem_cap = int(pltpu.get_tpu_info().vmem_capacity_bytes)
    except Exception:
        pass
    if vmem_cap >= 100 * 1024 * 1024:
        # 128-MiB parts (v5e / v6e): exploit the large VMEM with bigger tiles.
        return vmem_cap, 100 * 1024 * 1024, 64 * 1024 * 1024, 1024
    # 64-MiB parts (v7x) or unknown: stay conservative.
    return vmem_cap, 56 * 1024 * 1024, 26 * 1024 * 1024, 512


def _choose_blocks(B, lq_pad, lc_pad, d_pad, in_itemsize, mm_itemsize,
                   out_itemsize, w_itemsize, return_weights, budget, block_q_cap):
    """Pick (block_b, block_q) whose pipelined footprint fits the VMEM budget."""

    def footprint(bb, bq):
        # Double-buffered pipeline tiles.
        inputs = (bb * bq * d_pad * in_itemsize           # query tile
                  + bb * lc_pad * d_pad * in_itemsize     # context tile
                  + 3 * d_pad * d_pad * mm_itemsize)      # W_in^T / W_out halves
        outputs = bb * bq * d_pad * out_itemsize
        if return_weights:
            outputs += bb * bq * lc_pad * w_itemsize
        # Single-buffered in-kernel temporaries.
        temps = ((bb * bq * d_pad + bb * lc_pad * d_pad) * mm_itemsize   # in-kernel casts
                 + 2 * bb * bq * lc_pad * 4                               # scores, e
                 + 2 * bb * bq * d_pad * 4)                               # qp, mix (f32)
        return 2 * (inputs + outputs) + temps

    bq = min(block_q_cap, lq_pad)
    bq = max(16, (bq // 16) * 16)
    while bq > 16 and footprint(1, bq) > budget:
        bq = max(16, (bq // 2 // 16) * 16)

    bb = 1
    for cand in (2, 4, 8, 16, 32):
        if cand <= B and B % cand == 0 and footprint(cand, bq) <= budget:
            bb = cand
    return bb, bq


def attention_forward(query, context, w_in, w_out, *,
                      matmul_dtype=jnp.bfloat16,
                      block_b=None, block_q=None,
                      return_weights=True,
                      weights_dtype=jnp.float32,
                      vmem_budget_bytes=None,
                      interpret=False):
    """query: [B, Lq, D], context: [B, Lc, D],
       w_in:  [D, D]   (nn.Linear(D, D, bias=False).weight),
       w_out: [D, 2D]  (nn.Linear(2D, D, bias=False).weight).

    Returns (output [B, Lq, D] in query.dtype, weights [B, Lq, Lc] in weights_dtype
    or None when return_weights=False)."""
    B, Lq, D = query.shape
    Lc = context.shape[1]
    out_dtype = query.dtype

    in_itemsize = jnp.dtype(query.dtype).itemsize
    mm_itemsize = jnp.dtype(matmul_dtype).itemsize
    out_itemsize = jnp.dtype(out_dtype).itemsize
    w_itemsize = jnp.dtype(weights_dtype).itemsize

    # --- lane/sublane padding so every store is unmasked and the MXU runs full width ---
    d_pad = _round_up(D, 128)      # lane dim of all matmuls and of the output store
    lc_pad = _round_up(Lc, 128)    # lane dim of the attention-weights store
    lq_pad0 = _round_up(Lq, 16)    # sublane-pair multiple -> layout-free reshapes

    vmem_cap, vmem_limit, default_budget, block_q_cap = _vmem_policy()
    budget = default_budget if vmem_budget_bytes is None else vmem_budget_bytes

    # --- tile choice (chooser can shrink block_q as well as block_b) ---
    if block_b is None or block_q is None:
        auto_bb, auto_bq = _choose_blocks(B, lq_pad0, lc_pad, d_pad, in_itemsize,
                                          mm_itemsize, out_itemsize, w_itemsize,
                                          return_weights, budget, block_q_cap)
    if block_q is None:
        block_q = auto_bq
    block_q = max(16, min(_round_up(block_q, 16), lq_pad0))
    if block_b is None:
        block_b = auto_bb
    block_b = max(1, min(block_b, B))
    while B % block_b:
        block_b -= 1

    # Keep the grid at >= 2 steps so both TensorCores get work on multi-core parts (v7x);
    # the extra step is ~0.35 us on single-core parts.
    grid_q = (lq_pad0 + block_q - 1) // block_q
    if (B // block_b) * grid_q < 2:
        if block_b > 1:
            block_b //= 2
        elif block_q >= 32:
            block_q = max(16, (block_q // 2 // 16) * 16)
            grid_q = (lq_pad0 + block_q - 1) // block_q

    lq_pad = _round_up(lq_pad0, block_q)
    grid = (B // block_b, lq_pad // block_q)

    # --- pad inputs (original dtype: the bf16 cast happens inside the kernel) ---
    q_in = query
    if lq_pad != Lq or d_pad != D:
        q_in = jnp.pad(query, ((0, 0), (0, lq_pad - Lq), (0, d_pad - D)))
    c_in = context
    if lc_pad != Lc or d_pad != D:
        c_in = jnp.pad(context, ((0, 0), (0, lc_pad - Lc), (0, d_pad - D)))

    # --- glue: transpose / split / pad / cast the Linear weights so the kernel is x @ W ---
    w_in_t = jnp.transpose(w_in)                  # (D, D)  in x out
    w_out_mix_t = jnp.transpose(w_out[:, :D])     # (D, D)  acts on mix
    w_out_q_t = jnp.transpose(w_out[:, D:])       # (D, D)  acts on q'
    if d_pad != D:
        pad2 = ((0, d_pad - D), (0, d_pad - D))
        w_in_t = jnp.pad(w_in_t, pad2)
        w_out_mix_t = jnp.pad(w_out_mix_t, pad2)
        w_out_q_t = jnp.pad(w_out_q_t, pad2)
    w_in_t = w_in_t.astype(matmul_dtype)
    w_out_mix_t = w_out_mix_t.astype(matmul_dtype)
    w_out_q_t = w_out_q_t.astype(matmul_dtype)

    # --- advisory cost estimate for XLA's scheduler ---
    flops = (2 * B * lq_pad * d_pad * d_pad          # linear_in
             + 2 * B * lq_pad * lc_pad * d_pad       # scores
             + 2 * B * lq_pad * lc_pad * d_pad       # mix
             + 2 * B * lq_pad * (2 * d_pad) * d_pad)  # output projection
    transcendentals = B * lq_pad * lc_pad + B * lq_pad * d_pad  # exp + tanh
    bytes_accessed = (B * lq_pad * d_pad * in_itemsize
                      + B * lc_pad * d_pad * in_itemsize
                      + 3 * d_pad * d_pad * mm_itemsize
                      + B * lq_pad * d_pad * out_itemsize
                      + (B * lq_pad * lc_pad * w_itemsize if return_weights else 0))

    out_shapes = [jax.ShapeDtypeStruct((B, lq_pad, d_pad), out_dtype)]
    out_specs = [pl.BlockSpec((block_b, block_q, d_pad), lambda bi, qi: (bi, qi, 0))]
    if return_weights:
        out_shapes.append(jax.ShapeDtypeStruct((B, lq_pad, lc_pad), weights_dtype))
        out_specs.append(
            pl.BlockSpec((block_b, block_q, lc_pad), lambda bi, qi: (bi, qi, 0)))

    result = pl.pallas_call(
        _make_attention_kernel(return_weights, Lc, lc_pad, matmul_dtype),
        out_shape=tuple(out_shapes),
        grid_spec=pltpu.PrefetchScalarGridSpec(
            num_scalar_prefetch=0,
            grid=grid,
            in_specs=[
                pl.BlockSpec((block_b, block_q, d_pad), lambda bi, qi: (bi, qi, 0)),
                pl.BlockSpec((block_b, lc_pad, d_pad), lambda bi, qi: (bi, 0, 0)),
                # Constant-index weight blocks: Pallas skips re-DMA across grid steps.
                pl.BlockSpec((d_pad, d_pad), lambda bi, qi: (0, 0)),
                pl.BlockSpec((d_pad, d_pad), lambda bi, qi: (0, 0)),
                pl.BlockSpec((d_pad, d_pad), lambda bi, qi: (0, 0)),
            ],
            out_specs=out_specs,
        ),
        compiler_params=pltpu.CompilerParams(
            dimension_semantics=("parallel", "parallel"),
            vmem_limit_bytes=vmem_limit,
        ),
        cost_estimate=pl.CostEstimate(
            flops=int(flops),
            transcendentals=int(transcendentals),
            bytes_accessed=int(bytes_accessed),
        ),
        interpret=interpret,
    )(q_in, c_in, w_in_t, w_out_mix_t, w_out_q_t)

    if return_weights:
        out_p, w_p = result
    else:
        out_p = result[0] if isinstance(result, (list, tuple)) else result
        w_p = None

    out = out_p
    if lq_pad != Lq or d_pad != D:
        out = out[:, :Lq, :D]
    weights = None
    if return_weights:
        weights = w_p
        if lq_pad != Lq or lc_pad != Lc:
            weights = weights[:, :Lq, :Lc]
    return out, weights


def _reference(query, context, w_in, w_out, matmul_dtype=jnp.float32):
    """Pure-JAX reference. With matmul_dtype=bf16 it mirrors the kernel's precision path;
    with f32 it matches the original PyTorch module's numerics."""
    D = query.shape[-1]
    cast = lambda x: x.astype(matmul_dtype)
    qp = jnp.einsum("bqd,ed->bqe", cast(query), cast(w_in),
                    preferred_element_type=jnp.float32)
    scores = jnp.einsum("bqd,bkd->bqk", cast(qp), cast(context),
                        preferred_element_type=jnp.float32)
    weights = jax.nn.softmax(scores, axis=-1)
    mix = jnp.einsum("bqk,bkd->bqd", cast(weights), cast(context),
                     preferred_element_type=jnp.float32)
    out = jnp.tanh(
        jnp.einsum("bqd,ed->bqe", cast(mix), cast(w_out[:, :D]),
                   preferred_element_type=jnp.float32)
        + jnp.einsum("bqd,ed->bqe", cast(qp), cast(w_out[:, D:]),
                     preferred_element_type=jnp.float32)
    )
    return out, weights


if __name__ == "__main__":
    B, Lq, Lc, D = 8, 4, 8, 32

    key = jax.random.PRNGKey(0)
    k_q, k_c, k_win, k_wout = jax.random.split(key, 4)

    query = jax.random.normal(k_q, (B, Lq, D), dtype=jnp.float32)
    context = jax.random.normal(k_c, (B, Lc, D), dtype=jnp.float32)
    # Parameter shapes as in nn.Linear(out_features, in_features).weight
    w_in = jax.random.normal(k_win, (D, D), dtype=jnp.float32) * 0.1
    w_out = jax.random.normal(k_wout, (D, 2 * D), dtype=jnp.float32) * 0.1

    out, weights = attention_forward(query, context, w_in, w_out)
    out = jax.block_until_ready(out)
    weights = jax.block_until_ready(weights)
    assert out.shape == (B, Lq, D)
    assert weights.shape == (B, Lq, Lc)

    # Tight check against a reference that uses the same bf16-matmul / f32-accumulate path.
    ref_out_mm, ref_w_mm = _reference(query, context, w_in, w_out,
                                      matmul_dtype=jnp.bfloat16)
    assert jnp.allclose(out, ref_out_mm, atol=5e-3, rtol=5e-3)
    assert jnp.allclose(weights, ref_w_mm, atol=5e-3, rtol=5e-3)

    # Loose check against the full-f32 reference (the PyTorch module's numerics).
    ref_out_f32, ref_w_f32 = _reference(query, context, w_in, w_out,
                                        matmul_dtype=jnp.float32)
    assert jnp.allclose(out, ref_out_f32, atol=7.5e-2, rtol=7.5e-2)
    assert jnp.allclose(weights, ref_w_f32, atol=7.5e-2, rtol=7.5e-2)

    # return_weights=False path: skips the (B, Lq, Lc) writeback and normalizes after the
    # mix matmul with an approx (EUP) reciprocal.
    out_nw, w_none = attention_forward(query, context, w_in, w_out, return_weights=False)
    out_nw = jax.block_until_ready(out_nw)
    assert w_none is None
    assert jnp.allclose(out_nw, ref_out_f32, atol=7.5e-2, rtol=7.5e-2)

    print("KERNEL_OK")
</pallas_src>

<mosaic_0001>
module attributes {stable_mosaic.version = 11 : i64} {
  func.func @kernel(%arg0: i32, %arg1: i32, %arg2: memref<4x16x128xf32, #tpu.memory_space<vmem>>, %arg3: memref<4x128x128xf32, #tpu.memory_space<vmem>>, %arg4: memref<128x128xbf16, #tpu.memory_space<vmem>>, %arg5: memref<128x128xbf16, #tpu.memory_space<vmem>>, %arg6: memref<128x128xbf16, #tpu.memory_space<vmem>>, %arg7: memref<4x16x128xf32, #tpu.memory_space<vmem>>, %arg8: memref<4x16x128xf32, #tpu.memory_space<vmem>>) attributes {dimension_semantics = [#tpu.dimension_semantics<parallel>, #tpu.dimension_semantics<parallel>], iteration_bounds = array<i64: 2, 1>, scalar_prefetch = 0 : i64, scratch_operands = 0 : i64, tpu.core_type = #tpu.core_type<tc>, window_params = [{transform_indices = @transform_0, window_bounds = array<i64: 4, 16, 128>}, {transform_indices = @transform_1, window_bounds = array<i64: 4, 128, 128>}, {pipeline_mode = #tpu.pipeline_mode<synchronous>, transform_indices = @transform_2, window_bounds = array<i64: 128, 128>}, {pipeline_mode = #tpu.pipeline_mode<synchronous>, transform_indices = @transform_3, window_bounds = array<i64: 128, 128>}, {pipeline_mode = #tpu.pipeline_mode<synchronous>, transform_indices = @transform_4, window_bounds = array<i64: 128, 128>}, {transform_indices = @transform_5, window_bounds = array<i64: 4, 16, 128>}, {transform_indices = @transform_6, window_bounds = array<i64: 4, 16, 128>}]} {
    %c0 = arith.constant 0 : index
    %c0_0 = arith.constant 0 : index
    %c0_1 = arith.constant 0 : index
    %0 = vector.load %arg2[%c0, %c0_0, %c0_1] : memref<4x16x128xf32, #tpu.memory_space<vmem>>, vector<4x16x128xf32>
    %1 = arith.truncf %0 : vector<4x16x128xf32> to vector<4x16x128xbf16>
    %c0_2 = arith.constant 0 : index
    %c0_3 = arith.constant 0 : index
    %c0_4 = arith.constant 0 : index
    %2 = vector.load %arg3[%c0_2, %c0_3, %c0_4] : memref<4x128x128xf32, #tpu.memory_space<vmem>>, vector<4x128x128xf32>
    %3 = arith.truncf %2 : vector<4x128x128xf32> to vector<4x128x128xbf16>
    %4 = vector.shape_cast %1 : vector<4x16x128xbf16> to vector<64x128xbf16>
    %c0_5 = arith.constant 0 : index
    %c0_6 = arith.constant 0 : index
    %5 = vector.load %arg4[%c0_5, %c0_6] : memref<128x128xbf16, #tpu.memory_space<vmem>>, vector<128x128xbf16>
    %cst = arith.constant dense<0.000000e+00> : vector<64x128xf32>
    %6 = tpu.matmul %4, %5, %cst {dimension_numbers = #tpu.dot_dimension_numbers<[1], [0], [0], [1], [0, 0, 1, 1], [], []>} : vector<64x128xbf16>, vector<128x128xbf16>, vector<64x128xf32> -> vector<64x128xf32>
    %7 = vector.shape_cast %6 : vector<64x128xf32> to vector<4x16x128xf32>
    %8 = arith.truncf %7 : vector<4x16x128xf32> to vector<4x16x128xbf16>
    "tpu.trace_start"() <{level = 10 : i32, message = "bqd,bkd->bqk"}> : () -> ()
    %cst_7 = arith.constant dense<0.000000e+00> : vector<4x16x128xf32>
    %9 = tpu.matmul %8, %3, %cst_7 {dimension_numbers = #tpu.dot_dimension_numbers<[2], [2], [1], [1], [0, 0, 0, 1, 1, 1], [0], [0]>} : vector<4x16x128xbf16>, vector<4x128x128xbf16>, vector<4x16x128xf32> -> vector<4x16x128xf32>
    "tpu.trace_stop"() : () -> ()
    %10 = tpu.iota {dimensions = array<i32: 2>} : vector<4x16x128xi32>
    %c8_i32 = arith.constant 8 : i32
    %11 = vector.broadcast %c8_i32 : i32 to vector<4x16x128xi32>
    %12 = arith.cmpi slt, %10, %11 : vector<4x16x128xi32>
    %cst_8 = arith.constant 0xFF800000 : f32
    %13 = vector.broadcast %cst_8 : f32 to vector<4x16x128xf32>
    %14 = arith.select %12, %9, %13 : vector<4x16x128xi1>, vector<4x16x128xf32>
    %cst_9 = arith.constant dense<0xFF800000> : vector<4x16xf32>
    %15 = vector.multi_reduction <maximumf>, %14, %cst_9 [2] : vector<4x16x128xf32> to vector<4x16xf32>
    %16 = vector.shape_cast %15 : vector<4x16xf32> to vector<4x16x1xf32>
    %17 = vector.broadcast %16 : vector<4x16x1xf32> to vector<4x16x128xf32>
    %18 = arith.subf %14, %17 : vector<4x16x128xf32>
    %19 = math.exp %18 : vector<4x16x128xf32>
    %cst_10 = arith.constant dense<0.000000e+00> : vector<4x16xf32>
    %20 = vector.multi_reduction <add>, %19, %cst_10 [2] : vector<4x16x128xf32> to vector<4x16xf32>
    %21 = vector.shape_cast %20 : vector<4x16xf32> to vector<4x16x1xf32>
    %22 = tpu.reciprocal %21 : vector<4x16x1xf32> -> vector<4x16x1xf32>
    %23 = vector.broadcast %22 : vector<4x16x1xf32> to vector<4x16x128xf32>
    %24 = arith.mulf %19, %23 : vector<4x16x128xf32>
    %25 = arith.truncf %24 : vector<4x16x128xf32> to vector<4x16x128xbf16>
    "tpu.trace_start"() <{level = 10 : i32, message = "bqk,bkd->bqd"}> : () -> ()
    %cst_11 = arith.constant dense<0.000000e+00> : vector<4x16x128xf32>
    %26 = tpu.matmul %25, %3, %cst_11 {dimension_numbers = #tpu.dot_dimension_numbers<[2], [1], [1], [2], [0, 0, 0, 1, 1, 2], [0], [0]>} : vector<4x16x128xbf16>, vector<4x128x128xbf16>, vector<4x16x128xf32> -> vector<4x16x128xf32>
    "tpu.trace_stop"() : () -> ()
    %c0_12 = arith.constant 0 : index
    %c0_13 = arith.constant 0 : index
    %c0_14 = arith.constant 0 : index
    %27 = vector.load %arg8[%c0_12, %c0_13, %c0_14] : memref<4x16x128xf32, #tpu.memory_space<vmem>>, vector<4x16x128xf32>
    tpu.vector_store %arg8[%c0_12, %c0_13, %c0_14], %24 {strides = array<i32>} : memref<4x16x128xf32, #tpu.memory_space<vmem>>, vector<4x16x128xf32>,
    %28 = vector.shape_cast %26 : vector<4x16x128xf32> to vector<64x128xf32>
    %29 = arith.truncf %28 : vector<64x128xf32> to vector<64x128xbf16>
    %c0_15 = arith.constant 0 : index
    %c0_16 = arith.constant 0 : index
    %30 = vector.load %arg5[%c0_15, %c0_16] : memref<128x128xbf16, #tpu.memory_space<vmem>>, vector<128x128xbf16>
    %cst_17 = arith.constant dense<0.000000e+00> : vector<64x128xf32>
    %31 = tpu.matmul %29, %30, %cst_17 {dimension_numbers = #tpu.dot_dimension_numbers<[1], [0], [0], [1], [0, 0, 1, 1], [], []>} : vector<64x128xbf16>, vector<128x128xbf16>, vector<64x128xf32> -> vector<64x128xf32>
    %32 = arith.truncf %6 : vector<64x128xf32> to vector<64x128xbf16>
    %c0_18 = arith.constant 0 : index
    %c0_19 = arith.constant 0 : index
    %33 = vector.load %arg6[%c0_18, %c0_19] : memref<128x128xbf16, #tpu.memory_space<vmem>>, vector<128x128xbf16>
    %cst_20 = arith.constant dense<0.000000e+00> : vector<64x128xf32>
    %34 = tpu.matmul %32, %33, %cst_20 {dimension_numbers = #tpu.dot_dimension_numbers<[1], [0], [0], [1], [0, 0, 1, 1], [], []>} : vector<64x128xbf16>, vector<128x128xbf16>, vector<64x128xf32> -> vector<64x128xf32>
    %35 = arith.addf %31, %34 : vector<64x128xf32>
    %36 = math.tanh %35 : vector<64x128xf32>
    %37 = vector.shape_cast %36 : vector<64x128xf32> to vector<4x16x128xf32>
    %c0_21 = arith.constant 0 : index
    %c0_22 = arith.constant 0 : index
    %c0_23 = arith.constant 0 : index
    %38 = vector.load %arg7[%c0_21, %c0_22, %c0_23] : memref<4x16x128xf32, #tpu.memory_space<vmem>>, vector<4x16x128xf32>
    tpu.vector_store %arg7[%c0_21, %c0_22, %c0_23], %37 {strides = array<i32>} : memref<4x16x128xf32, #tpu.memory_space<vmem>>, vector<4x16x128xf32>,
    return
  }
  func.func @transform_0(%arg0: i32, %arg1: i32) -> (i32, i32, i32) {
    %c0_i32 = arith.constant 0 : i32
    %c0_i32_0 = arith.constant 0 : i32
    return %arg0, %arg1, %c0_i32 : i32, i32, i32
  }
  func.func @transform_1(%arg0: i32, %arg1: i32) -> (i32, i32, i32) {
    %c0_i32 = arith.constant 0 : i32
    %c0_i32_0 = arith.constant 0 : i32
    %c0_i32_1 = arith.constant 0 : i32
    return %arg0, %c0_i32, %c0_i32_0 : i32, i32, i32
  }
  func.func @transform_2(%arg0: i32, %arg1: i32) -> (i32, i32) {
    %c0_i32 = arith.constant 0 : i32
    %c0_i32_0 = arith.constant 0 : i32
    %c0_i32_1 = arith.constant 0 : i32
    return %c0_i32, %c0_i32_0 : i32, i32
  }
  func.func @transform_3(%arg0: i32, %arg1: i32) -> (i32, i32) {
    %c0_i32 = arith.constant 0 : i32
    %c0_i32_0 = arith.constant 0 : i32
    %c0_i32_1 = arith.constant 0 : i32
    return %c0_i32, %c0_i32_0 : i32, i32
  }
  func.func @transform_4(%arg0: i32, %arg1: i32) -> (i32, i32) {
    %c0_i32 = arith.constant 0 : i32
    %c0_i32_0 = arith.constant 0 : i32
    %c0_i32_1 = arith.constant 0 : i32
    return %c0_i32, %c0_i32_0 : i32, i32
  }
  func.func @transform_5(%arg0: i32, %arg1: i32) -> (i32, i32, i32) {
    %c0_i32 = arith.constant 0 : i32
    %c0_i32_0 = arith.constant 0 : i32
    return %arg0, %arg1, %c0_i32 : i32, i32, i32
  }
  func.func @transform_6(%arg0: i32, %arg1: i32) -> (i32, i32, i32) {
    %c0_i32 = arith.constant 0 : i32
    %c0_i32_0 = arith.constant 0 : i32
    return %arg0, %arg1, %c0_i32 : i32, i32, i32
  }
}

</mosaic_0001>

<llo_original>
// kernel: tpu_custom_call.1
$region0: #{tpu_custom_call.1}
  #allocation0 [shape = 'u32[]', space=smem, size = 0x4, offset = 0x4, fixed_abs, tag = 'smem constant byte address 0x4 - core index']
  #allocation1 [shape = 'u32[72,128]{1,0:T(1,128)}', space=vmem, size = 0x9000, scoped, tag = 'internal scratch']
  %s0 = inlined_call_operand.hbm [shape: f32[8,16,128], index: 0, kind: input, shape index: {}]
  %s1 = inlined_call_operand.hbm [shape: f32[8,128,128], index: 1, kind: input, shape index: {}]
  %s2 = inlined_call_operand.hbm [shape: bf16[128,128], index: 2, kind: input, shape index: {}]
  %s3 = inlined_call_operand.hbm [shape: bf16[128,128], index: 3, kind: input, shape index: {}]
  %s4 = inlined_call_operand.hbm [shape: bf16[128,128], index: 4, kind: input, shape index: {}]
  %s5 = inlined_call_operand.hbm [shape: f32[8,16,128], index: 5, kind: output, shape index: {0}]
  %s6 = inlined_call_operand.hbm [shape: f32[8,16,128], index: 6, kind: output, shape index: {1}]
  %7 = xla_tuple %s5, %s6
  %s8 = sld [smem:[#allocation0]]
  $region81: #{tpu_custom_call.1} parent=0
    _
  %s10 = ssub.s32 1, %s8
  %s11 = scalar_select 0, %s10, %s8
  $region1: #{tpu_custom_call.1} parent=0
    #allocation2 [shape = 'u8[65536]{0}', space=vmem, size = 0x10000, scoped, tag = 'input window, operand 0']
    #allocation3 [shape = 's32[2]{0}', space=sflag, size = 0x8, scoped, tag = 'scoped memory for tpu_custom_call.1']
    #allocation4 [shape = 's32[2]{0}', space=sflag, size = 0x8, scoped, tag = 'scoped memory for tpu_custom_call.1']
    #allocation5 [shape = 'u8[524288]{0}', space=vmem, size = 0x80000, scoped, tag = 'input window, operand 1']
    #allocation6 [shape = 's32[2]{0}', space=sflag, size = 0x8, scoped, tag = 'scoped memory for tpu_custom_call.1']
    #allocation7 [shape = 'u8[32768]{0}', space=vmem, size = 0x8000, scoped, tag = 'input window, operand 2, single buffered']
    #allocation8 [shape = 'u8[32768]{0}', space=vmem, size = 0x8000, scoped, tag = 'input window, operand 3, single buffered']
    #allocation9 [shape = 's32[1]{0}', space=sflag, size = 0x4, scoped, tag = 'scoped memory for tpu_custom_call.1']
    #allocation10 [shape = 'u8[32768]{0}', space=vmem, size = 0x8000, scoped, tag = 'input window, operand 4, single buffered']
    #allocation11 [shape = 'u8[65536]{0}', space=vmem, size = 0x10000, scoped, tag = 'output window, operand 0']
    #allocation12 [shape = 'u8[65536]{0}', space=vmem, size = 0x10000, scoped, tag = 'output window, operand 1']
    #allocation13 [shape = 's32[2]{0}', space=sflag, size = 0x8, scoped, tag = 'scoped memory for tpu_custom_call.1']
    %12 = vsyncpa [#allocation3], 0
    %s13 = scalar_lea.sflag [#allocation3], 1
    %14 = vsyncpa %s13, 0
    %15 = vsyncpa [#allocation6], 0
    %s16 = scalar_lea.sflag [#allocation6], 1
    %17 = vsyncpa %s16, 0
    %18 = vsyncpa [#allocation9], 0
    %19 = vsyncpa [#allocation4], 0
    %s20 = scalar_lea.sflag [#allocation4], 1
    %21 = vsyncpa %s20, 0
    %22 = vsyncpa [#allocation13], 0
    %s23 = scalar_lea.sflag [#allocation13], 1
    %24 = vsyncpa %s23, 0
    loop: start=0, step=1, limit=4
    $region2: #{tpu_custom_call.1} parent=1 // loop_pre_header
      _
    $region3: #{tpu_custom_call.1} parent=1 // loop_header
      %s26 = sphi 0, %s30
      %p27 = scmp.ge.s32.totalorder %s26, 4
      %s33 = sphi 0, %s45
      %s34 = sphi 0, %s41
      %s35 = sphi 0, %s33
      %s36 = sphi 0, %s34
      %s37 = sphi 0, %s35
      %s38 = sphi 0, %s36
      %s50 = sphi 0, %s52
      %s53 = sphi 0, %s50
      %s54 = sphi 0, %s53
      %s70 = sphi 0, %s54
      %s76 = sphi 0, %s78
      %s79 = sphi 0, %s76
      %s80 = sphi 0, %s79
      %s96 = sphi 0, %s80
      %s100 = sphi 0, %s100
      %s102 = sphi 0, %s100
      %s103 = sphi 0, %s102
      %s117 = sphi 0, %s103
      %s121 = sphi 0, %s121
      %s123 = sphi 0, %s121
      %s124 = sphi 0, %s123
      %s138 = sphi 0, %s124
      %s142 = sphi 0, %s142
      %s144 = sphi 0, %s142
      %s145 = sphi 0, %s144
      %s159 = sphi 0, %s145
      %s167 = sphi 0, %s169
      %s170 = sphi 0, %s167
      %s171 = sphi 0, %s170
      %s187 = sphi 0, %s171
      %s195 = sphi 0, %s197
      %s198 = sphi 0, %s195
      %s199 = sphi 0, %s198
      %s215 = sphi 0, %s199
    $region4: #{tpu_custom_call.1} parent=1 // loop_header_branch
      %29 = sbr.rel (%p27) target = $region8
    $region5: #{tpu_custom_call.1} parent=1 // loop_body
      %s31 = ssub.s32 %s26, 1
      %s32 = ssub.s32 %s26, 2
      %s39 = sadd.s32 1, %s34
      %p40 = scmp.ge.s32.totalorder %s39, 1
      %s41 = scalar_select %p40, 0, %s39
      %s42 = sadd.s32 1, %s33
      %s43 = scalar_select %p40, %s42, %s33
      %p44 = scmp.ge.s32.totalorder %s43, 2
      %s45 = scalar_select %p44, 0, %s43
      %s46 = ssub.s32 %s33, %s45
      %s47 = ssub.s32 %s34, %s41
      %s48 = sor.u32 %s46, %s47
      %p49 = scmp.eq.s32.totalorder %s48, 0
      %s51 = sadd.s32 %s50, 1
      %s52 = scalar_select %p49, %s50, %s51
      %p55 = pneg %p49
      %p56 = scmp.eq.s32.totalorder %s26, 1
      %p57 = por %p55, %p56
      %p58 = scmp.ne.s32.totalorder %s50, %s53
      %p59 = scmp.eq.s32.totalorder %s26, 0
      %p60 = por %p58, %p59
      %p61 = scmp.ne.s32.totalorder %s50, %s53
      %p62 = scmp.eq.s32.totalorder %s31, 1
      %p63 = por %p61, %p62
      %p64 = scmp.ne.s32.totalorder %s53, %s54
      %p65 = scmp.eq.s32.totalorder %s31, 0
      %p66 = por %p64, %p65
      %p67 = scmp.ne.s32.totalorder %s53, %s54
      %p68 = scmp.eq.s32.totalorder %s32, 1
      %p69 = por %p67, %p68
      %p71 = scmp.ne.s32.totalorder %s54, %s70
      %p72 = scmp.eq.s32.totalorder %s32, 0
      %p73 = por %p71, %p72
      %s74 = ssub.s32 %s33, %s45
      %p75 = scmp.eq.s32.totalorder %s74, 0
      %s77 = sadd.s32 %s76, 1
      %s78 = scalar_select %p75, %s76, %s77
      %p81 = pneg %p75
      %p82 = scmp.eq.s32.totalorder %s26, 1
      %p83 = por %p81, %p82
      %p84 = scmp.ne.s32.totalorder %s76, %s79
      %p85 = scmp.eq.s32.totalorder %s26, 0
      %p86 = por %p84, %p85
      %p87 = scmp.ne.s32.totalorder %s76, %s79
      %p88 = scmp.eq.s32.totalorder %s31, 1
      %p89 = por %p87, %p88
      %p90 = scmp.ne.s32.totalorder %s79, %s80
      %p91 = scmp.eq.s32.totalorder %s31, 0
      %p92 = por %p90, %p91
      %p93 = scmp.ne.s32.totalorder %s79, %s80
      %p94 = scmp.eq.s32.totalorder %s32, 1
      %p95 = por %p93, %p94
      %p97 = scmp.ne.s32.totalorder %s80, %s96
      %p98 = scmp.eq.s32.totalorder %s32, 0
      %p99 = por %p97, %p98
      %s101 = sadd.s32 %s100, 1
      %p104 = scmp.eq.s32.totalorder %s26, 1
      %p105 = scmp.ne.s32.totalorder %s100, %s102
      %p106 = scmp.eq.s32.totalorder %s26, 0
      %p107 = por %p105, %p106
      %p108 = scmp.ne.s32.totalorder %s100, %s102
      %p109 = scmp.eq.s32.totalorder %s31, 1
      %p110 = por %p108, %p109
      %p111 = scmp.ne.s32.totalorder %s102, %s103
      %p112 = scmp.eq.s32.totalorder %s31, 0
      %p113 = por %p111, %p112
      %p114 = scmp.ne.s32.totalorder %s102, %s103
      %p115 = scmp.eq.s32.totalorder %s32, 1
      %p116 = por %p114, %p115
      %p118 = scmp.ne.s32.totalorder %s103, %s117
      %p119 = scmp.eq.s32.totalorder %s32, 0
      %p120 = por %p118, %p119
      %s122 = sadd.s32 %s121, 1
      %p125 = scmp.eq.s32.totalorder %s26, 1
      %p126 = scmp.ne.s32.totalorder %s121, %s123
      %p127 = scmp.eq.s32.totalorder %s26, 0
      %p128 = por %p126, %p127
      %p129 = scmp.ne.s32.totalorder %s121, %s123
      %p130 = scmp.eq.s32.totalorder %s31, 1
      %p131 = por %p129, %p130
      %p132 = scmp.ne.s32.totalorder %s123, %s124
      %p133 = scmp.eq.s32.totalorder %s31, 0
      %p134 = por %p132, %p133
      %p135 = scmp.ne.s32.totalorder %s123, %s124
      %p136 = scmp.eq.s32.totalorder %s32, 1
      %p137 = por %p135, %p136
      %p139 = scmp.ne.s32.totalorder %s124, %s138
      %p140 = scmp.eq.s32.totalorder %s32, 0
      %p141 = por %p139, %p140
      %s143 = sadd.s32 %s142, 1
      %p146 = scmp.eq.s32.totalorder %s26, 1
      %p147 = scmp.ne.s32.totalorder %s142, %s144
      %p148 = scmp.eq.s32.totalorder %s26, 0
      %p149 = por %p147, %p148
      %p150 = scmp.ne.s32.totalorder %s142, %s144
      %p151 = scmp.eq.s32.totalorder %s31, 1
      %p152 = por %p150, %p151
      %p153 = scmp.ne.s32.totalorder %s144, %s145
      %p154 = scmp.eq.s32.totalorder %s31, 0
      %p155 = por %p153, %p154
      %p156 = scmp.ne.s32.totalorder %s144, %s145
      %p157 = scmp.eq.s32.totalorder %s32, 1
      %p158 = por %p156, %p157
      %p160 = scmp.ne.s32.totalorder %s145, %s159
      %p161 = scmp.eq.s32.totalorder %s32, 0
      %p162 = por %p160, %p161
      %s163 = ssub.s32 %s33, %s45
      %s164 = ssub.s32 %s34, %s41
      %s165 = sor.u32 %s163, %s164
      %p166 = scmp.eq.s32.totalorder %s165, 0
      %s168 = sadd.s32 %s167, 1
      %s169 = scalar_select %p166, %s167, %s168
      %p172 = pneg %p166
      %p173 = scmp.eq.s32.totalorder %s26, 1
      %p174 = por %p172, %p173
      %p175 = scmp.ne.s32.totalorder %s167, %s170
      %p176 = scmp.eq.s32.totalorder %s26, 0
      %p177 = por %p175, %p176
      %p178 = scmp.ne.s32.totalorder %s167, %s170
      %p179 = scmp.eq.s32.totalorder %s31, 1
      %p180 = por %p178, %p179
      %p181 = scmp.ne.s32.totalorder %s170, %s171
      %p182 = scmp.eq.s32.totalorder %s31, 0
      %p183 = por %p181, %p182
      %p184 = scmp.ne.s32.totalorder %s170, %s171
      %p185 = scmp.eq.s32.totalorder %s32, 1
      %p186 = por %p184, %p185
      %p188 = scmp.ne.s32.totalorder %s171, %s187
      %p189 = scmp.eq.s32.totalorder %s32, 0
      %p190 = por %p188, %p189
      %s191 = ssub.s32 %s33, %s45
      %s192 = ssub.s32 %s34, %s41
      %s193 = sor.u32 %s191, %s192
      %p194 = scmp.eq.s32.totalorder %s193, 0
      %s196 = sadd.s32 %s195, 1
      %s197 = scalar_select %p194, %s195, %s196
      %p200 = pneg %p194
      %p201 = scmp.eq.s32.totalorder %s26, 1
      %p202 = por %p200, %p201
      %p203 = scmp.ne.s32.totalorder %s195, %s198
      %p204 = scmp.eq.s32.totalorder %s26, 0
      %p205 = por %p203, %p204
      %p206 = scmp.ne.s32.totalorder %s195, %s198
      %p207 = scmp.eq.s32.totalorder %s31, 1
      %p208 = por %p206, %p207
      %p209 = scmp.ne.s32.totalorder %s198, %s199
      %p210 = scmp.eq.s32.totalorder %s31, 0
      %p211 = por %p209, %p210
      %p212 = scmp.ne.s32.totalorder %s198, %s199
      %p213 = scmp.eq.s32.totalorder %s32, 1
      %p214 = por %p212, %p213
      %p216 = scmp.ne.s32.totalorder %s199, %s215
      %p217 = scmp.eq.s32.totalorder %s32, 0
      %p218 = por %p216, %p217
      %p219 = scmp.le.s32.totalorder 1, %s26
      %p220 = scmp.lt.s32.totalorder %s26, 3
      %p221 = pnand %p219, %p220
      %p222 = pneg %p221
      // Predicated region
      $region9: #{tpu_custom_call.1} parent=5 // pred_check
        _
      $region10: #{tpu_custom_call.1} parent=5 // pred_check_branch
        %224 = sbr.rel (%p221) target = $region12
      $region11: #{tpu_custom_call.1} parent=5 // pred_region
        %s225 = ssub.s32 %s26, 1
        // Predicated region
        $region13: #{tpu_custom_call.1} parent=11 // pred_check
          %p226 = pneg %p113
        $region14: #{tpu_custom_call.1} parent=11 // pred_check_branch
          %228 = sbr.rel (%p226) target = $region16
        $region15: #{tpu_custom_call.1} parent=11 // pred_region
          %230 = vsyncadd [#allocation6], 0
          %s231 = sshll.u32 %s2, 4
          %s232 = int_to_ptr.hbm [resolvable:$true] %s231
          %s233 = sshll.u32 [#allocation7], 4
          %s234 = int_to_ptr.vmem [resolvable:$true] %s233
          %239 = dma.hbm_to_vmem [thread:$0]  %s232, 1024, %s234, [#allocation6], 64, 64, 4
        $region16: #{tpu_custom_call.1} parent=11 // pred_fallthru
          _
        // Predicated region
        $region17: #{tpu_custom_call.1} parent=11 // pred_check
          %p240 = pneg %p134
        $region18: #{tpu_custom_call.1} parent=11 // pred_check_branch
          %242 = sbr.rel (%p240) target = $region20
        $region19: #{tpu_custom_call.1} parent=11 // pred_region
          %244 = vsyncadd [#allocation9], 0
          %s245 = sshll.u32 %s3, 4
          %s246 = int_to_ptr.hbm [resolvable:$true] %s245
          %s247 = sshll.u32 [#allocation8], 4
          %s248 = int_to_ptr.vmem [resolvable:$true] %s247
          %253 = dma.hbm_to_vmem [thread:$0]  %s246, 1024, %s248, [#allocation9], 64, 64, 4
        $region20: #{tpu_custom_call.1} parent=11 // pred_fallthru
          _
        // Predicated region
        $region21: #{tpu_custom_call.1} parent=11 // pred_check
          %p254 = pneg %p155
        $region22: #{tpu_custom_call.1} parent=11 // pred_check_branch
          %256 = sbr.rel (%p254) target = $region24
        $region23: #{tpu_custom_call.1} parent=11 // pred_region
          %258 = vsyncadd [#allocation9], 0
          %s259 = sshll.u32 %s4, 4
          %s260 = int_to_ptr.hbm [resolvable:$true] %s259
          %s261 = sshll.u32 [#allocation10], 4
          %s262 = int_to_ptr.vmem [resolvable:$true] %s261
          %267 = dma.hbm_to_vmem [thread:$0]  %s260, 1024, %s262, [#allocation9], 64, 64, 4
        $region24: #{tpu_custom_call.1} parent=11 // pred_fallthru
          _
      $region12: #{tpu_custom_call.1} parent=5 // pred_fallthru
        _
      %p268 = scmp.lt.s32.totalorder %s26, 2
      // Predicated region
      $region25: #{tpu_custom_call.1} parent=5 // pred_check
        %p269 = pneg %p268
      $region26: #{tpu_custom_call.1} parent=5 // pred_check_branch
        %271 = sbr.rel (%p269) target = $region28
      $region27: #{tpu_custom_call.1} parent=5 // pred_region
        // Predicated region
        $region29: #{tpu_custom_call.1} parent=27 // pred_check
          %p272 = pneg %p60
        $region30: #{tpu_custom_call.1} parent=27 // pred_check_branch
          %274 = sbr.rel (%p272) target = $region32
        $region31: #{tpu_custom_call.1} parent=27 // pred_region
          %s275 = sand.u32 %s50, 1
          %s276 = scalar_lea.sflag [#allocation3], %s275
          %s277 = sand.u32 %s50, 1
          %s278 = smul.addr %s277, 64
          %s279 = scalar_lea.vmem [#allocation2], %s278
          %s280 = smul.u32 4, %s33
          %s281 = smul.u32 2, %s34
          %283 = vsyncadd %s276, 0
          %s284 = smul.addr %s280, 2
          %s285 = sadd.s32 %s281, %s284
          %s286 = smul.addr %s285, 8
          %s287 = scalar_lea.hbm %s0, %s286
          %s288 = sshll.u32 %s287, 4
          %s289 = int_to_ptr.hbm [resolvable:$true] %s288
          %s290 = sshll.u32 %s279, 4
          %s291 = int_to_ptr.vmem [resolvable:$true] %s290
          %296 = dma.hbm_to_vmem [thread:$0]  %s289, 1024, %s291, %s276, 128, 128, 8
        $region32: #{tpu_custom_call.1} parent=27 // pred_fallthru
          _
        // Predicated region
        $region33: #{tpu_custom_call.1} parent=27 // pred_check
          %p297 = pneg %p86
        $region34: #{tpu_custom_call.1} parent=27 // pred_check_branch
          %299 = sbr.rel (%p297) target = $region36
        $region35: #{tpu_custom_call.1} parent=27 // pred_region
          %s300 = sand.u32 %s26, 1
          %s301 = scalar_lea.sflag [#allocation6], %s300
          %s302 = sand.u32 %s76, 1
          %s303 = smul.addr %s302, 512
          %s304 = scalar_lea.vmem [#allocation5], %s303
          %s305 = smul.u32 4, %s33
          %307 = vsyncadd %s301, 0
          %s308 = smul.addr %s305, 16
          %s309 = smul.addr %s308, 8
          %s310 = scalar_lea.hbm %s1, %s309
          %s311 = sshll.u32 %s310, 4
          %s312 = int_to_ptr.hbm [resolvable:$true] %s311
          %s313 = sshll.u32 %s304, 4
          %s314 = int_to_ptr.vmem [resolvable:$true] %s313
          %319 = dma.hbm_to_vmem [thread:$0]  %s312, 8192, %s314, %s301, 128, 128, 8
        $region36: #{tpu_custom_call.1} parent=27 // pred_fallthru
          _
      $region28: #{tpu_custom_call.1} parent=5 // pred_fallthru
        _
      %p320 = scmp.le.s32.totalorder 1, %s26
      %p321 = scmp.lt.s32.totalorder %s26, 3
      %p322 = pnand %p320, %p321
      %p323 = pneg %p322
      // Predicated region
      $region37: #{tpu_custom_call.1} parent=5 // pred_check
        _
      $region38: #{tpu_custom_call.1} parent=5 // pred_check_branch
        %325 = sbr.rel (%p322) target = $region40
      $region39: #{tpu_custom_call.1} parent=5 // pred_region
        %s326 = ssub.s32 %s26, 1
        %s327 = sand.u32 %s53, 1
        %s328 = scalar_lea.sflag [#allocation3], %s327
        %s329 = sand.u32 %s53, 1
        %s330 = smul.addr %s329, 64
        %s331 = scalar_lea.vmem [#allocation2], %s330
        // Predicated region
        $region41: #{tpu_custom_call.1} parent=39 // pred_check
          %p332 = pneg %p66
        $region42: #{tpu_custom_call.1} parent=39 // pred_check_branch
          %334 = sbr.rel (%p332) target = $region44
        $region43: #{tpu_custom_call.1} parent=39 // pred_region
          %336 = dma.done %s328, 1024
        $region44: #{tpu_custom_call.1} parent=39 // pred_fallthru
          _
        %s337 = sand.u32 %s31, 1
        %s338 = scalar_lea.sflag [#allocation6], %s337
        %s339 = sand.u32 %s79, 1
        %s340 = smul.addr %s339, 512
        %s341 = scalar_lea.vmem [#allocation5], %s340
        // Predicated region
        $region45: #{tpu_custom_call.1} parent=39 // pred_check
          %p342 = pneg %p92
        $region46: #{tpu_custom_call.1} parent=39 // pred_check_branch
          %344 = sbr.rel (%p342) target = $region48
        $region47: #{tpu_custom_call.1} parent=39 // pred_region
          %346 = dma.done %s338, 8192
        $region48: #{tpu_custom_call.1} parent=39 // pred_fallthru
          _
        // Predicated region
        $region49: #{tpu_custom_call.1} parent=39 // pred_check
          %p347 = pneg %p113
        $region50: #{tpu_custom_call.1} parent=39 // pred_check_branch
          %349 = sbr.rel (%p347) target = $region52
        $region51: #{tpu_custom_call.1} parent=39 // pred_region
          %351 = dma.done [#allocation6], 1024
        $region52: #{tpu_custom_call.1} parent=39 // pred_fallthru
          _
        // Predicated region
        $region53: #{tpu_custom_call.1} parent=39 // pred_check
          %p352 = pneg %p134
        $region54: #{tpu_custom_call.1} parent=39 // pred_check_branch
          %354 = sbr.rel (%p352) target = $region56
        $region55: #{tpu_custom_call.1} parent=39 // pred_region
          %356 = dma.done [#allocation9], 1024
        $region56: #{tpu_custom_call.1} parent=39 // pred_fallthru
          _
        // Predicated region
        $region57: #{tpu_custom_call.1} parent=39 // pred_check
          %p357 = pneg %p155
        $region58: #{tpu_custom_call.1} parent=39 // pred_check_branch
          %359 = sbr.rel (%p357) target = $region60
        $region59: #{tpu_custom_call.1} parent=39 // pred_region
          %361 = dma.done [#allocation9], 1024
        $region60: #{tpu_custom_call.1} parent=39 // pred_fallthru
          _
        %s362 = sand.u32 %s53, 1
        %s363 = scalar_lea.sflag [#allocation3], %s362
        %s364 = sand.u32 %s53, 1
        %s365 = smul.addr %s364, 64
        %s366 = scalar_lea.vmem [#allocation2], %s365
        %p367 = pneg %p66
        %p368 = pneg %p63
        %s369 = sand.u32 %s31, 1
        %s370 = scalar_lea.sflag [#allocation6], %s369
        %s371 = sand.u32 %s79, 1
        %s372 = smul.addr %s371, 512
        %s373 = scalar_lea.vmem [#allocation5], %s372
        %p374 = pneg %p92
        %p375 = pneg %p89
        %p376 = pneg %p113
        %p377 = pneg %p110
        %p378 = pneg %p134
        %p379 = pneg %p131
        %p380 = pneg %p155
        %p381 = pneg %p152
        %p382 = pneg %p183
        %p383 = pneg %p180
        %s384 = sand.u32 %s170, 1
        %s385 = scalar_lea.sflag [#allocation4], %s384
        %s386 = sand.u32 %s170, 1
        %s387 = smul.addr %s386, 64
        %s388 = scalar_lea.vmem [#allocation11], %s387
        %p389 = pneg %p211
        %p390 = pneg %p208
        %s391 = sand.u32 %s198, 1
        %s392 = scalar_lea.sflag [#allocation13], %s391
        %s393 = sand.u32 %s198, 1
        %s394 = smul.addr %s393, 64
        %s395 = scalar_lea.vmem [#allocation12], %s394
        %s396 = smul.u32 4, %s35
        %s397 = smul.u32 2, %s36
        %s398 = smul.u32 4, %s35
        %s399 = smul.u32 4, %s35
        %s400 = smul.u32 2, %s36
        %s401 = smul.u32 4, %s35
        %s402 = smul.u32 2, %s36
        %v403 = vld [vmem:[%s331] sm:$0xff]
        %v404 = vld [vmem:[%s331 + $0x8] sm:$0xff]
        %v405 = vld [vmem:[%s331 + $0x10] sm:$0xff]
        %v406 = vld [vmem:[%s331 + $0x18] sm:$0xff]
        %v407 = vld [vmem:[%s331 + $0x20] sm:$0xff]
        %v408 = vld [vmem:[%s331 + $0x28] sm:$0xff]
        %v409 = vld [vmem:[%s331 + $0x30] sm:$0xff]
        %v410 = vld [vmem:[%s331 + $0x38] sm:$0xff]
        %v411 = vpack.c.bf16 %v403, %v403
        %v412 = vpack.c.bf16 %v404, %v404
        %v413 = vpack.c.bf16 %v405, %v405
        %v414 = vpack.c.bf16 %v406, %v406
        %v415 = vpack.c.bf16 %v407, %v407
        %v416 = vpack.c.bf16 %v408, %v408
        %v417 = vpack.c.bf16 %v409, %v409
        %v418 = vpack.c.bf16 %v410, %v410
        %v419 = vld [vmem:[%s341] sm:$0xff]
        %v420 = vld [vmem:[%s341 + $0x8] sm:$0xff]
        %v421 = vld [vmem:[%s341 + $0x10] sm:$0xff]
        %v422 = vld [vmem:[%s341 + $0x18] sm:$0xff]
        %v423 = vld [vmem:[%s341 + $0x20] sm:$0xff]
        %v424 = vld [vmem:[%s341 + $0x28] sm:$0xff]
        %v425 = vld [vmem:[%s341 + $0x30] sm:$0xff]
        %v426 = vld [vmem:[%s341 + $0x38] sm:$0xff]
        %v427 = vld [vmem:[%s341 + $0x40] sm:$0xff]
        %v428 = vld [vmem:[%s341 + $0x48] sm:$0xff]
        %v429 = vld [vmem:[%s341 + $0x50] sm:$0xff]
        %v430 = vld [vmem:[%s341 + $0x58] sm:$0xff]
        %v431 = vld [vmem:[%s341 + $0x60] sm:$0xff]
        %v432 = vld [vmem:[%s341 + $0x68] sm:$0xff]
        %v433 = vld [vmem:[%s341 + $0x70] sm:$0xff]
        %v434 = vld [vmem:[%s341 + $0x78] sm:$0xff]
        %v435 = vld [vmem:[%s341 + $0x80] sm:$0xff]
        %v436 = vld [vmem:[%s341 + $0x88] sm:$0xff]
        %v437 = vld [vmem:[%s341 + $0x90] sm:$0xff]
        %v438 = vld [vmem:[%s341 + $0x98] sm:$0xff]
        %v439 = vld [vmem:[%s341 + $0xa0] sm:$0xff]
        %v440 = vld [vmem:[%s341 + $0xa8] sm:$0xff]
        %v441 = vld [vmem:[%s341 + $0xb0] sm:$0xff]
        %v442 = vld [vmem:[%s341 + $0xb8] sm:$0xff]
        %v443 = vld [vmem:[%s341 + $0xc0] sm:$0xff]
        %v444 = vld [vmem:[%s341 + $0xc8] sm:$0xff]
        %v445 = vld [vmem:[%s341 + $0xd0] sm:$0xff]
        %v446 = vld [vmem:[%s341 + $0xd8] sm:$0xff]
        %v447 = vld [vmem:[%s341 + $0xe0] sm:$0xff]
        %v448 = vld [vmem:[%s341 + $0xe8] sm:$0xff]
        %v449 = vld [vmem:[%s341 + $0xf0] sm:$0xff]
        %v450 = vld [vmem:[%s341 + $0xf8] sm:$0xff]
        %v451 = vld [vmem:[%s341 + $0x100] sm:$0xff]
        %v452 = vld [vmem:[%s341 + $0x108] sm:$0xff]
        %v453 = vld [vmem:[%s341 + $0x110] sm:$0xff]
        %v454 = vld [vmem:[%s341 + $0x118] sm:$0xff]
        %v455 = vld [vmem:[%s341 + $0x120] sm:$0xff]
        %v456 = vld [vmem:[%s341 + $0x128] sm:$0xff]
        %v457 = vld [vmem:[%s341 + $0x130] sm:$0xff]
        %v458 = vld [vmem:[%s341 + $0x138] sm:$0xff]
        %v459 = vld [vmem:[%s341 + $0x140] sm:$0xff]
        %v460 = vld [vmem:[%s341 + $0x148] sm:$0xff]
        %v461 = vld [vmem:[%s341 + $0x150] sm:$0xff]
        %v462 = vld [vmem:[%s341 + $0x158] sm:$0xff]
        %v463 = vld [vmem:[%s341 + $0x160] sm:$0xff]
        %v464 = vld [vmem:[%s341 + $0x168] sm:$0xff]
        %v465 = vld [vmem:[%s341 + $0x170] sm:$0xff]
        %v466 = vld [vmem:[%s341 + $0x178] sm:$0xff]
        %v467 = vld [vmem:[%s341 + $0x180] sm:$0xff]
        %v468 = vld [vmem:[%s341 + $0x188] sm:$0xff]
        %v469 = vld [vmem:[%s341 + $0x190] sm:$0xff]
        %v470 = vld [vmem:[%s341 + $0x198] sm:$0xff]
        %v471 = vld [vmem:[%s341 + $0x1a0] sm:$0xff]
        %v472 = vld [vmem:[%s341 + $0x1a8] sm:$0xff]
        %v473 = vld [vmem:[%s341 + $0x1b0] sm:$0xff]
        %v474 = vld [vmem:[%s341 + $0x1b8] sm:$0xff]
        %v475 = vld [vmem:[%s341 + $0x1c0] sm:$0xff]
        %v476 = vld [vmem:[%s341 + $0x1c8] sm:$0xff]
        %v477 = vld [vmem:[%s341 + $0x1d0] sm:$0xff]
        %v478 = vld [vmem:[%s341 + $0x1d8] sm:$0xff]
        %v479 = vld [vmem:[%s341 + $0x1e0] sm:$0xff]
        %v480 = vld [vmem:[%s341 + $0x1e8] sm:$0xff]
        %v481 = vld [vmem:[%s341 + $0x1f0] sm:$0xff]
        %v482 = vld [vmem:[%s341 + $0x1f8] sm:$0xff]
        %v483 = vpack.c.bf16 %v419, %v419
        %v484 = vpack.c.bf16 %v420, %v420
        %v485 = vpack.c.bf16 %v421, %v421
        %v486 = vpack.c.bf16 %v422, %v422
        %v487 = vpack.c.bf16 %v423, %v423
        %v488 = vpack.c.bf16 %v424, %v424
        %v489 = vpack.c.bf16 %v425, %v425
        %v490 = vpack.c.bf16 %v426, %v426
        %v491 = vpack.c.bf16 %v427, %v427
        %v492 = vpack.c.bf16 %v428, %v428
        %v493 = vpack.c.bf16 %v429, %v429
        %v494 = vpack.c.bf16 %v430, %v430
        %v495 = vpack.c.bf16 %v431, %v431
        %v496 = vpack.c.bf16 %v432, %v432
        %v497 = vpack.c.bf16 %v433, %v433
        %v498 = vpack.c.bf16 %v434, %v434
        %v499 = vpack.c.bf16 %v435, %v435
        %v500 = vpack.c.bf16 %v436, %v436
        %v501 = vpack.c.bf16 %v437, %v437
        %v502 = vpack.c.bf16 %v438, %v438
        %v503 = vpack.c.bf16 %v439, %v439
        %v504 = vpack.c.bf16 %v440, %v440
        %v505 = vpack.c.bf16 %v441, %v441
        %v506 = vpack.c.bf16 %v442, %v442
        %v507 = vpack.c.bf16 %v443, %v443
        %v508 = vpack.c.bf16 %v444, %v444
        %v509 = vpack.c.bf16 %v445, %v445
        %v510 = vpack.c.bf16 %v446, %v446
        %v511 = vpack.c.bf16 %v447, %v447
        %v512 = vpack.c.bf16 %v448, %v448
        %v513 = vpack.c.bf16 %v449, %v449
        %v514 = vpack.c.bf16 %v450, %v450
        %v515 = vpack.c.bf16 %v451, %v451
        %v516 = vpack.c.bf16 %v452, %v452
        %v517 = vpack.c.bf16 %v453, %v453
        %v518 = vpack.c.bf16 %v454, %v454
        %v519 = vpack.c.bf16 %v455, %v455
        %v520 = vpack.c.bf16 %v456, %v456
        %v521 = vpack.c.bf16 %v457, %v457
        %v522 = vpack.c.bf16 %v458, %v458
        %v523 = vpack.c.bf16 %v459, %v459
        %v524 = vpack.c.bf16 %v460, %v460
        %v525 = vpack.c.bf16 %v461, %v461
        %v526 = vpack.c.bf16 %v462, %v462
        %v527 = vpack.c.bf16 %v463, %v463
        %v528 = vpack.c.bf16 %v464, %v464
        %v529 = vpack.c.bf16 %v465, %v465
        %v530 = vpack.c.bf16 %v466, %v466
        %v531 = vpack.c.bf16 %v467, %v467
        %v532 = vpack.c.bf16 %v468, %v468
        %v533 = vpack.c.bf16 %v469, %v469
        %v534 = vpack.c.bf16 %v470, %v470
        %v535 = vpack.c.bf16 %v471, %v471
        %v536 = vpack.c.bf16 %v472, %v472
        %v537 = vpack.c.bf16 %v473, %v473
        %v538 = vpack.c.bf16 %v474, %v474
        %v539 = vpack.c.bf16 %v475, %v475
        %v540 = vpack.c.bf16 %v476, %v476
        %v541 = vpack.c.bf16 %v477, %v477
        %v542 = vpack.c.bf16 %v478, %v478
        %v543 = vpack.c.bf16 %v479, %v479
        %v544 = vpack.c.bf16 %v480, %v480
        %v545 = vpack.c.bf16 %v481, %v481
        %v546 = vpack.c.bf16 %v482, %v482
        %v547 = vld [vmem:[#allocation7] sm:$0xf]
        %v548 = vld [vmem:[#allocation7 + $0x4] sm:$0xf]
        %v549 = vld [vmem:[#allocation7 + $0x8] sm:$0xf]
        %v550 = vld [vmem:[#allocation7 + $0xc] sm:$0xf]
        %v551 = vld [vmem:[#allocation7 + $0x10] sm:$0xf]
        %v552 = vld [vmem:[#allocation7 + $0x14] sm:$0xf]
        %v553 = vld [vmem:[#allocation7 + $0x18] sm:$0xf]
        %v554 = vld [vmem:[#allocation7 + $0x1c] sm:$0xf]
        %v555 = vld [vmem:[#allocation7 + $0x20] sm:$0xf]
        %v556 = vld [vmem:[#allocation7 + $0x24] sm:$0xf]
        %v557 = vld [vmem:[#allocation7 + $0x28] sm:$0xf]
        %v558 = vld [vmem:[#allocation7 + $0x2c] sm:$0xf]
        %v559 = vld [vmem:[#allocation7 + $0x30] sm:$0xf]
        %v560 = vld [vmem:[#allocation7 + $0x34] sm:$0xf]
        %v561 = vld [vmem:[#allocation7 + $0x38] sm:$0xf]
        %v562 = vld [vmem:[#allocation7 + $0x3c] sm:$0xf]
        %v571 = vunpack.c.l.b16 %v411
        %v572 = vunpack.c.l.b16 %v412
        %v573 = vunpack.c.l.b16 %v413
        %v574 = vunpack.c.l.b16 %v414
        %v575 = vunpack.c.l.b16 %v415
        %v576 = vunpack.c.l.b16 %v416
        %v577 = vunpack.c.l.b16 %v417
        %v578 = vunpack.c.l.b16 %v418
        %v579 = vpack.c.b16 %v572, %v571
        %v580 = vpack.c.b16 %v574, %v573
        %v581 = vpack.c.b16 %v576, %v575
        %v582 = vpack.c.b16 %v578, %v577
        %v603 = vunpack.c.l.b16 %v547
        %v604 = vunpack.c.l.b16 %v548
        %v605 = vunpack.c.l.b16 %v549
        %v606 = vunpack.c.l.b16 %v550
        %v607 = vunpack.c.l.b16 %v551
        %v608 = vunpack.c.l.b16 %v552
        %v609 = vunpack.c.l.b16 %v553
        %v610 = vunpack.c.l.b16 %v554
        %v611 = vunpack.c.l.b16 %v555
        %v612 = vunpack.c.l.b16 %v556
        %v613 = vunpack.c.l.b16 %v557
        %v614 = vunpack.c.l.b16 %v558
        %v615 = vunpack.c.l.b16 %v559
        %v616 = vunpack.c.l.b16 %v560
        %v617 = vunpack.c.l.b16 %v561
        %v618 = vunpack.c.l.b16 %v562
        %v619 = vpack.c.b16 %v604, %v603
        %v620 = vpack.c.b16 %v606, %v605
        %v621 = vpack.c.b16 %v608, %v607
        %v622 = vpack.c.b16 %v610, %v609
        %v623 = vpack.c.b16 %v612, %v611
        %v624 = vpack.c.b16 %v614, %v613
        %v625 = vpack.c.b16 %v616, %v615
        %v626 = vpack.c.b16 %v618, %v617
        %635 = vmatpush.bf16.msra.mxu0 %v626
        %636 = vmatpush.bf16.msra.mxu0 %v625
        %637 = vmatpush.bf16.msra.mxu0 %v624
        %638 = vmatpush.bf16.msra.mxu0 %v623
        %639 = vmatpush.bf16.msra.mxu0 %v622
        %640 = vmatpush.bf16.msra.mxu0 %v621
        %641 = vmatpush.bf16.msra.mxu0 %v620
        %642 = vmatpush.bf16.msra.mxu0 %v619
        %643 = vmatmul.bf16.gmra.mxu0 %v579
        %v644 = vpop.f32.mrf.mxu0
        %v645 = vadd.f32 0.0, %v644
        %v646 = vpop.f32.mrf.mxu0
        %v647 = vadd.f32 0.0, %v646
        %648 = vmatmul.bf16.gmra.mxu0 %v580
        %v649 = vpop.f32.mrf.mxu0
        %v650 = vadd.f32 0.0, %v649
        %v651 = vpop.f32.mrf.mxu0
        %v652 = vadd.f32 0.0, %v651
        %653 = vmatmul.bf16.gmra.mxu0 %v581
        %v654 = vpop.f32.mrf.mxu0
        %v655 = vadd.f32 0.0, %v654
        %v656 = vpop.f32.mrf.mxu0
        %v657 = vadd.f32 0.0, %v656
        %658 = vmatmul.bf16.gmra.mxu0 %v582
        %v659 = vpop.f32.mrf.mxu0
        %v660 = vadd.f32 0.0, %v659
        %v661 = vpop.f32.mrf.mxu0
        %v662 = vadd.f32 0.0, %v661
        %663 = vdwg.mxu0
        %v664 = vpack.c.bf16 %v645, %v645
        %v665 = vpack.c.bf16 %v647, %v647
        %v666 = vpack.c.bf16 %v650, %v650
        %v667 = vpack.c.bf16 %v652, %v652
        %v668 = vpack.c.bf16 %v655, %v655
        %v669 = vpack.c.bf16 %v657, %v657
        %v670 = vpack.c.bf16 %v660, %v660
        %v671 = vpack.c.bf16 %v662, %v662
        %v674 = vunpack.c.l.b16 %v664
        %v675 = vunpack.c.l.b16 %v665
        %v676 = vpack.c.b16 %v675, %v674
        %v694 = vunpack.c.l.b16 %v483
        %v695 = vunpack.c.l.b16 %v484
        %v696 = vunpack.c.l.b16 %v485
        %v697 = vunpack.c.l.b16 %v486
        %v698 = vunpack.c.l.b16 %v487
        %v699 = vunpack.c.l.b16 %v488
        %v700 = vunpack.c.l.b16 %v489
        %v701 = vunpack.c.l.b16 %v490
        %v702 = vunpack.c.l.b16 %v491
        %v703 = vunpack.c.l.b16 %v492
        %v704 = vunpack.c.l.b16 %v493
        %v705 = vunpack.c.l.b16 %v494
        %v706 = vunpack.c.l.b16 %v495
        %v707 = vunpack.c.l.b16 %v496
        %v708 = vunpack.c.l.b16 %v497
        %v709 = vunpack.c.l.b16 %v498
        %v710 = vpack.c.b16 %v695, %v694
        %v711 = vpack.c.b16 %v697, %v696
        %v712 = vpack.c.b16 %v699, %v698
        %v713 = vpack.c.b16 %v701, %v700
        %v714 = vpack.c.b16 %v703, %v702
        %v715 = vpack.c.b16 %v705, %v704
        %v716 = vpack.c.b16 %v707, %v706
        %v717 = vpack.c.b16 %v709, %v708
        %726 = vmatpush.bf16.xpose.msra.mxu0 %v717
        %727 = vmatpush.bf16.xpose.msra.mxu0 %v716
        %728 = vmatpush.bf16.xpose.msra.mxu0 %v715
        %729 = vmatpush.bf16.xpose.msra.mxu0 %v714
        %730 = vmatpush.bf16.xpose.msra.mxu0 %v713
        %731 = vmatpush.bf16.xpose.msra.mxu0 %v712
        %732 = vmatpush.bf16.xpose.msra.mxu0 %v711
        %733 = vmatpush.bf16.xpose.msra.mxu0 %v710
        %734 = vmatmul.bf16.gmra.mxu0 %v676
        %v735 = vpop.f32.mrf.mxu0
        %v736 = vadd.f32 0.0, %v735
        %v737 = vpop.f32.mrf.mxu0
        %v738 = vadd.f32 0.0, %v737
        %739 = vdwg.mxu0
        %v742 = vunpack.c.l.b16 %v666
        %v743 = vunpack.c.l.b16 %v667
        %v744 = vpack.c.b16 %v743, %v742
        %v762 = vunpack.c.l.b16 %v499
        %v763 = vunpack.c.l.b16 %v500
        %v764 = vunpack.c.l.b16 %v501
        %v765 = vunpack.c.l.b16 %v502
        %v766 = vunpack.c.l.b16 %v503
        %v767 = vunpack.c.l.b16 %v504
        %v768 = vunpack.c.l.b16 %v505
        %v769 = vunpack.c.l.b16 %v506
        %v770 = vunpack.c.l.b16 %v507
        %v771 = vunpack.c.l.b16 %v508
        %v772 = vunpack.c.l.b16 %v509
        %v773 = vunpack.c.l.b16 %v510
        %v774 = vunpack.c.l.b16 %v511
        %v775 = vunpack.c.l.b16 %v512
        %v776 = vunpack.c.l.b16 %v513
        %v777 = vunpack.c.l.b16 %v514
        %v778 = vpack.c.b16 %v763, %v762
        %v779 = vpack.c.b16 %v765, %v764
        %v780 = vpack.c.b16 %v767, %v766
        %v781 = vpack.c.b16 %v769, %v768
        %v782 = vpack.c.b16 %v771, %v770
        %v783 = vpack.c.b16 %v773, %v772
        %v784 = vpack.c.b16 %v775, %v774
        %v785 = vpack.c.b16 %v777, %v776
        %794 = vmatpush.bf16.xpose.msra.mxu0 %v785
        %795 = vmatpush.bf16.xpose.msra.mxu0 %v784
        %796 = vmatpush.bf16.xpose.msra.mxu0 %v783
        %797 = vmatpush.bf16.xpose.msra.mxu0 %v782
        %798 = vmatpush.bf16.xpose.msra.mxu0 %v781
        %799 = vmatpush.bf16.xpose.msra.mxu0 %v780
        %800 = vmatpush.bf16.xpose.msra.mxu0 %v779
        %801 = vmatpush.bf16.xpose.msra.mxu0 %v778
        %802 = vmatmul.bf16.gmra.mxu0 %v744
        %v803 = vpop.f32.mrf.mxu0
        %v804 = vadd.f32 0.0, %v803
        %v805 = vpop.f32.mrf.mxu0
        %v806 = vadd.f32 0.0, %v805
        %807 = vdwg.mxu0
        %v810 = vunpack.c.l.b16 %v668
        %v811 = vunpack.c.l.b16 %v669
        %v812 = vpack.c.b16 %v811, %v810
        %v830 = vunpack.c.l.b16 %v515
        %v831 = vunpack.c.l.b16 %v516
        %v832 = vunpack.c.l.b16 %v517
        %v833 = vunpack.c.l.b16 %v518
        %v834 = vunpack.c.l.b16 %v519
        %v835 = vunpack.c.l.b16 %v520
        %v836 = vunpack.c.l.b16 %v521
        %v837 = vunpack.c.l.b16 %v522
        %v838 = vunpack.c.l.b16 %v523
        %v839 = vunpack.c.l.b16 %v524
        %v840 = vunpack.c.l.b16 %v525
        %v841 = vunpack.c.l.b16 %v526
        %v842 = vunpack.c.l.b16 %v527
        %v843 = vunpack.c.l.b16 %v528
        %v844 = vunpack.c.l.b16 %v529
        %v845 = vunpack.c.l.b16 %v530
        %v846 = vpack.c.b16 %v831, %v830
        %v847 = vpack.c.b16 %v833, %v832
        %v848 = vpack.c.b16 %v835, %v834
        %v849 = vpack.c.b16 %v837, %v836
        %v850 = vpack.c.b16 %v839, %v838
        %v851 = vpack.c.b16 %v841, %v840
        %v852 = vpack.c.b16 %v843, %v842
        %v853 = vpack.c.b16 %v845, %v844
        %862 = vmatpush.bf16.xpose.msra.mxu0 %v853
        %863 = vmatpush.bf16.xpose.msra.mxu0 %v852
        %864 = vmatpush.bf16.xpose.msra.mxu0 %v851
        %865 = vmatpush.bf16.xpose.msra.mxu0 %v850
        %866 = vmatpush.bf16.xpose.msra.mxu0 %v849
        %867 = vmatpush.bf16.xpose.msra.mxu0 %v848
        %868 = vmatpush.bf16.xpose.msra.mxu0 %v847
        %869 = vmatpush.bf16.xpose.msra.mxu0 %v846
        %870 = vmatmul.bf16.gmra.mxu0 %v812
        %v871 = vpop.f32.mrf.mxu0
        %v872 = vadd.f32 0.0, %v871
        %v873 = vpop.f32.mrf.mxu0
        %v874 = vadd.f32 0.0, %v873
        %875 = vdwg.mxu0
        %v878 = vunpack.c.l.b16 %v670
        %v879 = vunpack.c.l.b16 %v671
        %v880 = vpack.c.b16 %v879, %v878
        %v898 = vunpack.c.l.b16 %v531
        %v899 = vunpack.c.l.b16 %v532
        %v900 = vunpack.c.l.b16 %v533
        %v901 = vunpack.c.l.b16 %v534
        %v902 = vunpack.c.l.b16 %v535
        %v903 = vunpack.c.l.b16 %v536
        %v904 = vunpack.c.l.b16 %v537
        %v905 = vunpack.c.l.b16 %v538
        %v906 = vunpack.c.l.b16 %v539
        %v907 = vunpack.c.l.b16 %v540
        %v908 = vunpack.c.l.b16 %v541
        %v909 = vunpack.c.l.b16 %v542
        %v910 = vunpack.c.l.b16 %v543
        %v911 = vunpack.c.l.b16 %v544
        %v912 = vunpack.c.l.b16 %v545
        %v913 = vunpack.c.l.b16 %v546
        %v914 = vpack.c.b16 %v899, %v898
        %v915 = vpack.c.b16 %v901, %v900
        %v916 = vpack.c.b16 %v903, %v902
        %v917 = vpack.c.b16 %v905, %v904
        %v918 = vpack.c.b16 %v907, %v906
        %v919 = vpack.c.b16 %v909, %v908
        %v920 = vpack.c.b16 %v911, %v910
        %v921 = vpack.c.b16 %v913, %v912
        %930 = vmatpush.bf16.xpose.msra.mxu0 %v921
        %931 = vmatpush.bf16.xpose.msra.mxu0 %v920
        %932 = vmatpush.bf16.xpose.msra.mxu0 %v919
        %933 = vmatpush.bf16.xpose.msra.mxu0 %v918
        %934 = vmatpush.bf16.xpose.msra.mxu0 %v917
        %935 = vmatpush.bf16.xpose.msra.mxu0 %v916
        %936 = vmatpush.bf16.xpose.msra.mxu0 %v915
        %937 = vmatpush.bf16.xpose.msra.mxu0 %v914
        %938 = vmatmul.bf16.gmra.mxu0 %v880
        %v939 = vpop.f32.mrf.mxu0
        %v940 = vadd.f32 0.0, %v939
        %v941 = vpop.f32.mrf.mxu0
        %v942 = vadd.f32 0.0, %v941
        %943 = vdwg.mxu0
        %v944 = vlaneseq
        %v945 = vand.u32 %v944, 127
        %vm946 = vcmp.lt.s32.totalorder %v945, 8
        %v947 = vsel %vm946, %v736, -inf
        %v948 = vsel %vm946, %v738, -inf
        %v949 = vsel %vm946, %v804, -inf
        %v950 = vsel %vm946, %v806, -inf
        %v951 = vsel %vm946, %v872, -inf
        %v952 = vsel %vm946, %v874, -inf
        %v953 = vsel %vm946, %v940, -inf
        %v954 = vsel %vm946, %v942, -inf
        %955 = vmax.xlane.f32.xlu0 %v947
        %v956 = vpop.xlane.xlu0 %955
        %957 = vmax.xlane.f32.xlu0 %v948
        %v958 = vpop.xlane.xlu0 %957
        %959 = vmax.xlane.f32.xlu0 %v949
        %v960 = vpop.xlane.xlu0 %959
        %961 = vmax.xlane.f32.xlu0 %v950
        %v962 = vpop.xlane.xlu0 %961
        %963 = vmax.xlane.f32.xlu0 %v951
        %v964 = vpop.xlane.xlu0 %963
        %965 = vmax.xlane.f32.xlu0 %v952
        %v966 = vpop.xlane.xlu0 %965
        %967 = vmax.xlane.f32.xlu0 %v953
        %v968 = vpop.xlane.xlu0 %967
        %969 = vmax.xlane.f32.xlu0 %v954
        %v970 = vpop.xlane.xlu0 %969
        %v971 = vsub.f32 %v947, %v956
        %v972 = vsub.f32 %v948, %v958
        %v973 = vsub.f32 %v949, %v960
        %v974 = vsub.f32 %v950, %v962
        %v975 = vsub.f32 %v951, %v964
        %v976 = vsub.f32 %v952, %v966
        %v977 = vsub.f32 %v953, %v968
        %v978 = vsub.f32 %v954, %v970
        %v979 = vmul.f32 %v971, 1.442695
        %v980 = vpow.pop %v979
        %v981 = vmul.f32 %v972, 1.442695
        %v982 = vpow.pop %v981
        %v983 = vmul.f32 %v973, 1.442695
        %v984 = vpow.pop %v983
        %v985 = vmul.f32 %v974, 1.442695
        %v986 = vpow.pop %v985
        %v987 = vmul.f32 %v975, 1.442695
        %v988 = vpow.pop %v987
        %v989 = vmul.f32 %v976, 1.442695
        %v990 = vpow.pop %v989
        %v991 = vmul.f32 %v977, 1.442695
        %v992 = vpow.pop %v991
        %v993 = vmul.f32 %v978, 1.442695
        %v994 = vpow.pop %v993
        %995 = vadd.xlane.f32.xlu0 %v980
        %v996 = vpop.xlane.xlu0 %995
        %997 = vadd.xlane.f32.xlu0 %v982
        %v998 = vpop.xlane.xlu0 %997
        %999 = vadd.xlane.f32.xlu0 %v984
        %v1000 = vpop.xlane.xlu0 %999
        %1001 = vadd.xlane.f32.xlu0 %v986
        %v1002 = vpop.xlane.xlu0 %1001
        %1003 = vadd.xlane.f32.xlu0 %v988
        %v1004 = vpop.xlane.xlu0 %1003
        %1005 = vadd.xlane.f32.xlu0 %v990
        %v1006 = vpop.xlane.xlu0 %1005
        %1007 = vadd.xlane.f32.xlu0 %v992
        %v1008 = vpop.xlane.xlu0 %1007
        %1009 = vadd.xlane.f32.xlu0 %v994
        %v1010 = vpop.xlane.xlu0 %1009
        %v1011 = vrcp.pop %v996
        %v1012 = vmul.f32 %v996, %v1011
        %v1013 = vsub.f32 1.0, %v1012
        %v1014 = vmul.f32 %v1011, %v1013
        %v1015 = vadd.f32 %v1011, %v1014
        %vm1016 = vweird.f32 %v996
        %vm1017 = vweird.f32 %v1011
        %vm1018 = vmor %vm1016, %vm1017
        %v1019 = vsel %vm1018, %v1011, %v1015
        %v1020 = vand.u32 2147483647, %v996
        %vm1021 = vcmp.eq.f32.partialorder %v1020, 8.507059e+37
        %v1022 = vand.u32 %v996, 2147483648
        %v1023 = vor.u32 1.1754944e-38, %v1022
        %v1024 = vsel %vm1021, %v1023, %v1019
        %v1025 = vrcp.pop %v998
        %v1026 = vmul.f32 %v998, %v1025
        %v1027 = vsub.f32 1.0, %v1026
        %v1028 = vmul.f32 %v1025, %v1027
        %v1029 = vadd.f32 %v1025, %v1028
        %vm1030 = vweird.f32 %v998
        %vm1031 = vweird.f32 %v1025
        %vm1032 = vmor %vm1030, %vm1031
        %v1033 = vsel %vm1032, %v1025, %v1029
        %v1034 = vand.u32 2147483647, %v998
        %vm1035 = vcmp.eq.f32.partialorder %v1034, 8.507059e+37
        %v1036 = vand.u32 %v998, 2147483648
        %v1037 = vor.u32 1.1754944e-38, %v1036
        %v1038 = vsel %vm1035, %v1037, %v1033
        %v1039 = vrcp.pop %v1000
        %v1040 = vmul.f32 %v1000, %v1039
        %v1041 = vsub.f32 1.0, %v1040
        %v1042 = vmul.f32 %v1039, %v1041
        %v1043 = vadd.f32 %v1039, %v1042
        %vm1044 = vweird.f32 %v1000
        %vm1045 = vweird.f32 %v1039
        %vm1046 = vmor %vm1044, %vm1045
        %v1047 = vsel %vm1046, %v1039, %v1043
        %v1048 = vand.u32 2147483647, %v1000
        %vm1049 = vcmp.eq.f32.partialorder %v1048, 8.507059e+37
        %v1050 = vand.u32 %v1000, 2147483648
        %v1051 = vor.u32 1.1754944e-38, %v1050
        %v1052 = vsel %vm1049, %v1051, %v1047
        %v1053 = vrcp.pop %v1002
        %v1054 = vmul.f32 %v1002, %v1053
        %v1055 = vsub.f32 1.0, %v1054
        %v1056 = vmul.f32 %v1053, %v1055
        %v1057 = vadd.f32 %v1053, %v1056
        %vm1058 = vweird.f32 %v1002
        %vm1059 = vweird.f32 %v1053
        %vm1060 = vmor %vm1058, %vm1059
        %v1061 = vsel %vm1060, %v1053, %v1057
        %v1062 = vand.u32 2147483647, %v1002
        %vm1063 = vcmp.eq.f32.partialorder %v1062, 8.507059e+37
        %v1064 = vand.u32 %v1002, 2147483648
        %v1065 = vor.u32 1.1754944e-38, %v1064
        %v1066 = vsel %vm1063, %v1065, %v1061
        %v1067 = vrcp.pop %v1004
        %v1068 = vmul.f32 %v1004, %v1067
        %v1069 = vsub.f32 1.0, %v1068
        %v1070 = vmul.f32 %v1067, %v1069
        %v1071 = vadd.f32 %v1067, %v1070
        %vm1072 = vweird.f32 %v1004
        %vm1073 = vweird.f32 %v1067
        %vm1074 = vmor %vm1072, %vm1073
        %v1075 = vsel %vm1074, %v1067, %v1071
        %v1076 = vand.u32 2147483647, %v1004
        %vm1077 = vcmp.eq.f32.partialorder %v1076, 8.507059e+37
        %v1078 = vand.u32 %v1004, 2147483648
        %v1079 = vor.u32 1.1754944e-38, %v1078
        %v1080 = vsel %vm1077, %v1079, %v1075
        %v1081 = vrcp.pop %v1006
        %v1082 = vmul.f32 %v1006, %v1081
        %v1083 = vsub.f32 1.0, %v1082
        %v1084 = vmul.f32 %v1081, %v1083
        %v1085 = vadd.f32 %v1081, %v1084
        %vm1086 = vweird.f32 %v1006
        %vm1087 = vweird.f32 %v1081
        %vm1088 = vmor %vm1086, %vm1087
        %v1089 = vsel %vm1088, %v1081, %v1085
        %v1090 = vand.u32 2147483647, %v1006
        %vm1091 = vcmp.eq.f32.partialorder %v1090, 8.507059e+37
        %v1092 = vand.u32 %v1006, 2147483648
        %v1093 = vor.u32 1.1754944e-38, %v1092
        %v1094 = vsel %vm1091, %v1093, %v1089
        %v1095 = vrcp.pop %v1008
        %v1096 = vmul.f32 %v1008, %v1095
        %v1097 = vsub.f32 1.0, %v1096
        %v1098 = vmul.f32 %v1095, %v1097
        %v1099 = vadd.f32 %v1095, %v1098
        %vm1100 = vweird.f32 %v1008
        %vm1101 = vweird.f32 %v1095
        %vm1102 = vmor %vm1100, %vm1101
        %v1103 = vsel %vm1102, %v1095, %v1099
        %v1104 = vand.u32 2147483647, %v1008
        %vm1105 = vcmp.eq.f32.partialorder %v1104, 8.507059e+37
        %v1106 = vand.u32 %v1008, 2147483648
        %v1107 = vor.u32 1.1754944e-38, %v1106
        %v1108 = vsel %vm1105, %v1107, %v1103
        %v1109 = vrcp.pop %v1010
        %v1110 = vmul.f32 %v1010, %v1109
        %v1111 = vsub.f32 1.0, %v1110
        %v1112 = vmul.f32 %v1109, %v1111
        %v1113 = vadd.f32 %v1109, %v1112
        %vm1114 = vweird.f32 %v1010
        %vm1115 = vweird.f32 %v1109
        %vm1116 = vmor %vm1114, %vm1115
        %v1117 = vsel %vm1116, %v1109, %v1113
        %v1118 = vand.u32 2147483647, %v1010
        %vm1119 = vcmp.eq.f32.partialorder %v1118, 8.507059e+37
        %v1120 = vand.u32 %v1010, 2147483648
        %v1121 = vor.u32 1.1754944e-38, %v1120
        %v1122 = vsel %vm1119, %v1121, %v1117
        %v1123 = vmul.f32 %v980, %v1024
        %v1124 = vmul.f32 %v982, %v1038
        %v1125 = vmul.f32 %v984, %v1052
        %v1126 = vmul.f32 %v986, %v1066
        %v1127 = vmul.f32 %v988, %v1080
        %v1128 = vmul.f32 %v990, %v1094
        %v1129 = vmul.f32 %v992, %v1108
        %v1130 = vmul.f32 %v994, %v1122
        %v1131 = vpack.c.bf16 %v1123, %v1123
        %v1132 = vpack.c.bf16 %v1124, %v1124
        %v1133 = vpack.c.bf16 %v1125, %v1125
        %v1134 = vpack.c.bf16 %v1126, %v1126
        %v1135 = vpack.c.bf16 %v1127, %v1127
        %v1136 = vpack.c.bf16 %v1128, %v1128
        %v1137 = vpack.c.bf16 %v1129, %v1129
        %v1138 = vpack.c.bf16 %v1130, %v1130
        %v1141 = vunpack.c.l.b16 %v1131
        %v1142 = vunpack.c.l.b16 %v1132
        %v1143 = vpack.c.b16 %v1142, %v1141
        %1145 = vmatpush.bf16.msra.mxu0 %v717
        %1146 = vmatpush.bf16.msra.mxu0 %v716
        %1147 = vmatpush.bf16.msra.mxu0 %v715
        %1148 = vmatpush.bf16.msra.mxu0 %v714
        %1149 = vmatpush.bf16.msra.mxu0 %v713
        %1150 = vmatpush.bf16.msra.mxu0 %v712
        %1151 = vmatpush.bf16.msra.mxu0 %v711
        %1152 = vmatpush.bf16.msra.mxu0 %v710
        %1153 = vmatmul.bf16.gmra.mxu0 %v1143
        %v1154 = vpop.f32.mrf.mxu0
        %v1155 = vadd.f32 0.0, %v1154
        %v1156 = vpop.f32.mrf.mxu0
        %v1157 = vadd.f32 0.0, %v1156
        %1158 = vdwg.mxu0
        %v1161 = vunpack.c.l.b16 %v1133
        %v1162 = vunpack.c.l.b16 %v1134
        %v1163 = vpack.c.b16 %v1162, %v1161
        %1165 = vmatpush.bf16.msra.mxu0 %v785
        %1166 = vmatpush.bf16.msra.mxu0 %v784
        %1167 = vmatpush.bf16.msra.mxu0 %v783
        %1168 = vmatpush.bf16.msra.mxu0 %v782
        %1169 = vmatpush.bf16.msra.mxu0 %v781
        %1170 = vmatpush.bf16.msra.mxu0 %v780
        %1171 = vmatpush.bf16.msra.mxu0 %v779
        %1172 = vmatpush.bf16.msra.mxu0 %v778
        %1173 = vmatmul.bf16.gmra.mxu0 %v1163
        %v1174 = vpop.f32.mrf.mxu0
        %v1175 = vadd.f32 0.0, %v1174
        %v1176 = vpop.f32.mrf.mxu0
        %v1177 = vadd.f32 0.0, %v1176
        %1178 = vdwg.mxu0
        %v1181 = vunpack.c.l.b16 %v1135
        %v1182 = vunpack.c.l.b16 %v1136
        %v1183 = vpack.c.b16 %v1182, %v1181
        %1185 = vmatpush.bf16.msra.mxu0 %v853
        %1186 = vmatpush.bf16.msra.mxu0 %v852
        %1187 = vmatpush.bf16.msra.mxu0 %v851
        %1188 = vmatpush.bf16.msra.mxu0 %v850
        %1189 = vmatpush.bf16.msra.mxu0 %v849
        %1190 = vmatpush.bf16.msra.mxu0 %v848
        %1191 = vmatpush.bf16.msra.mxu0 %v847
        %1192 = vmatpush.bf16.msra.mxu0 %v846
        %1193 = vmatmul.bf16.gmra.mxu0 %v1183
        %v1194 = vpop.f32.mrf.mxu0
        %v1195 = vadd.f32 0.0, %v1194
        %v1196 = vpop.f32.mrf.mxu0
        %v1197 = vadd.f32 0.0, %v1196
        %1198 = vdwg.mxu0
        %v1201 = vunpack.c.l.b16 %v1137
        %v1202 = vunpack.c.l.b16 %v1138
        %v1203 = vpack.c.b16 %v1202, %v1201
        %1205 = vmatpush.bf16.msra.mxu0 %v921
        %1206 = vmatpush.bf16.msra.mxu0 %v920
        %1207 = vmatpush.bf16.msra.mxu0 %v919
        %1208 = vmatpush.bf16.msra.mxu0 %v918
        %1209 = vmatpush.bf16.msra.mxu0 %v917
        %1210 = vmatpush.bf16.msra.mxu0 %v916
        %1211 = vmatpush.bf16.msra.mxu0 %v915
        %1212 = vmatpush.bf16.msra.mxu0 %v914
        %1213 = vmatmul.bf16.gmra.mxu0 %v1203
        %v1214 = vpop.f32.mrf.mxu0
        %v1215 = vadd.f32 0.0, %v1214
        %v1216 = vpop.f32.mrf.mxu0
        %v1217 = vadd.f32 0.0, %v1216
        %1218 = vdwg.mxu0
        %1219 = vst [vmem:[%s395] sm:$0xff] %v1123
        %1220 = vst [vmem:[%s395 + $0x8] sm:$0xff] %v1124
        %1221 = vst [vmem:[%s395 + $0x10] sm:$0xff] %v1125
        %1222 = vst [vmem:[%s395 + $0x18] sm:$0xff] %v1126
        %1223 = vst [vmem:[%s395 + $0x20] sm:$0xff] %v1127
        %1224 = vst [vmem:[%s395 + $0x28] sm:$0xff] %v1128
        %1225 = vst [vmem:[%s395 + $0x30] sm:$0xff] %v1129
        %1226 = vst [vmem:[%s395 + $0x38] sm:$0xff] %v1130
        %v1227 = vpack.c.bf16 %v1157, %v1155
        %v1228 = vpack.c.bf16 %v1177, %v1175
        %v1229 = vpack.c.bf16 %v1197, %v1195
        %v1230 = vpack.c.bf16 %v1217, %v1215
        %v1231 = vld [vmem:[#allocation8] sm:$0xf]
        %v1232 = vld [vmem:[#allocation8 + $0x4] sm:$0xf]
        %v1233 = vld [vmem:[#allocation8 + $0x8] sm:$0xf]
        %v1234 = vld [vmem:[#allocation8 + $0xc] sm:$0xf]
        %v1235 = vld [vmem:[#allocation8 + $0x10] sm:$0xf]
        %v1236 = vld [vmem:[#allocation8 + $0x14] sm:$0xf]
        %v1237 = vld [vmem:[#allocation8 + $0x18] sm:$0xf]
        %v1238 = vld [vmem:[#allocation8 + $0x1c] sm:$0xf]
        %v1239 = vld [vmem:[#allocation8 + $0x20] sm:$0xf]
        %v1240 = vld [vmem:[#allocation8 + $0x24] sm:$0xf]
        %v1241 = vld [vmem:[#allocation8 + $0x28] sm:$0xf]
        %v1242 = vld [vmem:[#allocation8 + $0x2c] sm:$0xf]
        %v1243 = vld [vmem:[#allocation8 + $0x30] sm:$0xf]
        %v1244 = vld [vmem:[#allocation8 + $0x34] sm:$0xf]
        %v1245 = vld [vmem:[#allocation8 + $0x38] sm:$0xf]
        %v1246 = vld [vmem:[#allocation8 + $0x3c] sm:$0xf]
        %v1247 = vpack.c.bf16 %v647, %v645
        %v1248 = vpack.c.bf16 %v652, %v650
        %v1249 = vpack.c.bf16 %v657, %v655
        %v1250 = vpack.c.bf16 %v662, %v660
        %v1251 = vld [vmem:[#allocation10] sm:$0xf]
        %v1252 = vld [vmem:[#allocation10 + $0x4] sm:$0xf]
        %v1253 = vld [vmem:[#allocation10 + $0x8] sm:$0xf]
        %v1254 = vld [vmem:[#allocation10 + $0xc] sm:$0xf]
        %v1255 = vld [vmem:[#allocation10 + $0x10] sm:$0xf]
        %v1256 = vld [vmem:[#allocation10 + $0x14] sm:$0xf]
        %v1257 = vld [vmem:[#allocation10 + $0x18] sm:$0xf]
        %v1258 = vld [vmem:[#allocation10 + $0x1c] sm:$0xf]
        %v1259 = vld [vmem:[#allocation10 + $0x20] sm:$0xf]
        %v1260 = vld [vmem:[#allocation10 + $0x24] sm:$0xf]
        %v1261 = vld [vmem:[#allocation10 + $0x28] sm:$0xf]
        %v1262 = vld [vmem:[#allocation10 + $0x2c] sm:$0xf]
        %v1263 = vld [vmem:[#allocation10 + $0x30] sm:$0xf]
        %v1264 = vld [vmem:[#allocation10 + $0x34] sm:$0xf]
        %v1265 = vld [vmem:[#allocation10 + $0x38] sm:$0xf]
        %v1266 = vld [vmem:[#allocation10 + $0x3c] sm:$0xf]
        %v1283 = vunpack.c.l.b16 %v1251
        %v1284 = vunpack.c.l.b16 %v1252
        %v1285 = vunpack.c.l.b16 %v1253
        %v1286 = vunpack.c.l.b16 %v1254
        %v1287 = vunpack.c.l.b16 %v1255
        %v1288 = vunpack.c.l.b16 %v1256
        %v1289 = vunpack.c.l.b16 %v1257
        %v1290 = vunpack.c.l.b16 %v1258
        %v1291 = vunpack.c.l.b16 %v1259
        %v1292 = vunpack.c.l.b16 %v1260
        %v1293 = vunpack.c.l.b16 %v1261
        %v1294 = vunpack.c.l.b16 %v1262
        %v1295 = vunpack.c.l.b16 %v1263
        %v1296 = vunpack.c.l.b16 %v1264
        %v1297 = vunpack.c.l.b16 %v1265
        %v1298 = vunpack.c.l.b16 %v1266
        %v1299 = vpack.c.b16 %v1284, %v1283
        %v1300 = vpack.c.b16 %v1286, %v1285
        %v1301 = vpack.c.b16 %v1288, %v1287
        %v1302 = vpack.c.b16 %v1290, %v1289
        %v1303 = vpack.c.b16 %v1292, %v1291
        %v1304 = vpack.c.b16 %v1294, %v1293
        %v1305 = vpack.c.b16 %v1296, %v1295
        %v1306 = vpack.c.b16 %v1298, %v1297
        %1315 = vmatpush.bf16.msra.mxu0 %v1306
        %1316 = vmatpush.bf16.msra.mxu0 %v1305
        %1317 = vmatpush.bf16.msra.mxu0 %v1304
        %1318 = vmatpush.bf16.msra.mxu0 %v1303
        %1319 = vmatpush.bf16.msra.mxu0 %v1302
        %1320 = vmatpush.bf16.msra.mxu0 %v1301
        %1321 = vmatpush.bf16.msra.mxu0 %v1300
        %1322 = vmatpush.bf16.msra.mxu0 %v1299
        %1323 = vmatmul.bf16.gmra.mxu0 %v1247
        %v1324 = vpop.f32.mrf.mxu0
        %v1325 = vadd.f32 0.0, %v1324
        %v1326 = vpop.f32.mrf.mxu0
        %v1327 = vadd.f32 0.0, %v1326
        %1328 = vmatmul.bf16.gmra.mxu0 %v1248
        %v1329 = vpop.f32.mrf.mxu0
        %v1330 = vadd.f32 0.0, %v1329
        %v1331 = vpop.f32.mrf.mxu0
        %v1332 = vadd.f32 0.0, %v1331
        %1333 = vmatmul.bf16.gmra.mxu0 %v1249
        %v1334 = vpop.f32.mrf.mxu0
        %v1335 = vadd.f32 0.0, %v1334
        %v1336 = vpop.f32.mrf.mxu0
        %v1337 = vadd.f32 0.0, %v1336
        %1338 = vmatmul.bf16.gmra.mxu0 %v1250
        %v1339 = vpop.f32.mrf.mxu0
        %v1340 = vadd.f32 0.0, %v1339
        %v1341 = vpop.f32.mrf.mxu0
        %v1342 = vadd.f32 0.0, %v1341
        %1343 = vdwg.mxu0
        %v1360 = vunpack.c.l.b16 %v1231
        %v1361 = vunpack.c.l.b16 %v1232
        %v1362 = vunpack.c.l.b16 %v1233
        %v1363 = vunpack.c.l.b16 %v1234
        %v1364 = vunpack.c.l.b16 %v1235
        %v1365 = vunpack.c.l.b16 %v1236
        %v1366 = vunpack.c.l.b16 %v1237
        %v1367 = vunpack.c.l.b16 %v1238
        %v1368 = vunpack.c.l.b16 %v1239
        %v1369 = vunpack.c.l.b16 %v1240
        %v1370 = vunpack.c.l.b16 %v1241
        %v1371 = vunpack.c.l.b16 %v1242
        %v1372 = vunpack.c.l.b16 %v1243
        %v1373 = vunpack.c.l.b16 %v1244
        %v1374 = vunpack.c.l.b16 %v1245
        %v1375 = vunpack.c.l.b16 %v1246
        %v1376 = vpack.c.b16 %v1361, %v1360
        %v1377 = vpack.c.b16 %v1363, %v1362
        %v1378 = vpack.c.b16 %v1365, %v1364
        %v1379 = vpack.c.b16 %v1367, %v1366
        %v1380 = vpack.c.b16 %v1369, %v1368
        %v1381 = vpack.c.b16 %v1371, %v1370
        %v1382 = vpack.c.b16 %v1373, %v1372
        %v1383 = vpack.c.b16 %v1375, %v1374
        %1392 = vmatpush.bf16.msra.mxu0 %v1383
        %1393 = vmatpush.bf16.msra.mxu0 %v1382
        %1394 = vmatpush.bf16.msra.mxu0 %v1381
        %1395 = vmatpush.bf16.msra.mxu0 %v1380
        %1396 = vmatpush.bf16.msra.mxu0 %v1379
        %1397 = vmatpush.bf16.msra.mxu0 %v1378
        %1398 = vmatpush.bf16.msra.mxu0 %v1377
        %1399 = vmatpush.bf16.msra.mxu0 %v1376
        %1400 = vmatmul.bf16.gmra.mxu0 %v1227
        %v1401 = vpop.f32.mrf.mxu0
        %v1402 = vadd.f32 %v1325, %v1401
        %v1403 = vpop.f32.mrf.mxu0
        %v1404 = vadd.f32 %v1327, %v1403
        %1405 = vmatmul.bf16.gmra.mxu0 %v1228
        %v1406 = vpop.f32.mrf.mxu0
        %v1407 = vadd.f32 %v1330, %v1406
        %v1408 = vpop.f32.mrf.mxu0
        %v1409 = vadd.f32 %v1332, %v1408
        %1410 = vmatmul.bf16.gmra.mxu0 %v1229
        %v1411 = vpop.f32.mrf.mxu0
        %v1412 = vadd.f32 %v1335, %v1411
        %v1413 = vpop.f32.mrf.mxu0
        %v1414 = vadd.f32 %v1337, %v1413
        %1415 = vmatmul.bf16.gmra.mxu0 %v1230
        %v1416 = vpop.f32.mrf.mxu0
        %v1417 = vadd.f32 %v1340, %v1416
        %v1418 = vpop.f32.mrf.mxu0
        %v1419 = vadd.f32 %v1342, %v1418
        %1420 = vdwg.mxu0
        %v1421 = vtanh.pop %v1402
        %v1422 = vtanh.pop %v1404
        %v1423 = vtanh.pop %v1407
        %v1424 = vtanh.pop %v1409
        %v1425 = vtanh.pop %v1412
        %v1426 = vtanh.pop %v1414
        %v1427 = vtanh.pop %v1417
        %v1428 = vtanh.pop %v1419
        %1429 = vst [vmem:[%s388] sm:$0xff] %v1421
        %1430 = vst [vmem:[%s388 + $0x8] sm:$0xff] %v1422
        %1431 = vst [vmem:[%s388 + $0x10] sm:$0xff] %v1423
        %1432 = vst [vmem:[%s388 + $0x18] sm:$0xff] %v1424
        %1433 = vst [vmem:[%s388 + $0x20] sm:$0xff] %v1425
        %1434 = vst [vmem:[%s388 + $0x28] sm:$0xff] %v1426
        %1435 = vst [vmem:[%s388 + $0x30] sm:$0xff] %v1427
        %1436 = vst [vmem:[%s388 + $0x38] sm:$0xff] %v1428
        %s1437 = sand.u32 %s170, 1
        %s1438 = scalar_lea.sflag [#allocation4], %s1437
        %s1439 = sand.u32 %s170, 1
        %s1440 = smul.addr %s1439, 64
        %s1441 = scalar_lea.vmem [#allocation11], %s1440
        %s1442 = sand.u32 %s198, 1
        %s1443 = scalar_lea.sflag [#allocation13], %s1442
        %s1444 = sand.u32 %s198, 1
        %s1445 = smul.addr %s1444, 64
        %s1446 = scalar_lea.vmem [#allocation12], %s1445
        // Predicated region
        $region61: #{tpu_custom_call.1} parent=39 // pred_check
          %p1447 = pneg %p180
        $region62: #{tpu_custom_call.1} parent=39 // pred_check_branch
          %1449 = sbr.rel (%p1447) target = $region64
        $region63: #{tpu_custom_call.1} parent=39 // pred_region
          %s1450 = smul.u32 4, %s35
          %s1451 = smul.u32 2, %s36
          %1453 = vsyncadd %s1438, 0
          %s1454 = smul.addr %s1450, 2
          %s1455 = sadd.s32 %s1451, %s1454
          %s1456 = smul.addr %s1455, 8
          %s1457 = scalar_lea.hbm %s5, %s1456
          %s1458 = sshll.u32 %s1441, 4
          %s1459 = int_to_ptr.vmem [resolvable:$true] %s1458
          %s1460 = sshll.u32 %s1457, 4
          %s1461 = int_to_ptr.hbm [resolvable:$true] %s1460
          %1466 = dma.vmem_to_hbm [thread:$0]  %s1459, 1024, %s1461, %s1438, 128, 128, 8
        $region64: #{tpu_custom_call.1} parent=39 // pred_fallthru
          _
        // Predicated region
        $region65: #{tpu_custom_call.1} parent=39 // pred_check
          %p1467 = pneg %p208
        $region66: #{tpu_custom_call.1} parent=39 // pred_check_branch
          %1469 = sbr.rel (%p1467) target = $region68
        $region67: #{tpu_custom_call.1} parent=39 // pred_region
          %s1470 = smul.u32 4, %s35
          %s1471 = smul.u32 2, %s36
          %1473 = vsyncadd %s1443, 0
          %s1474 = smul.addr %s1470, 2
          %s1475 = sadd.s32 %s1471, %s1474
          %s1476 = smul.addr %s1475, 8
          %s1477 = scalar_lea.hbm %s6, %s1476
          %s1478 = sshll.u32 %s1446, 4
          %s1479 = int_to_ptr.vmem [resolvable:$true] %s1478
          %s1480 = sshll.u32 %s1477, 4
          %s1481 = int_to_ptr.hbm [resolvable:$true] %s1480
          %1486 = dma.vmem_to_hbm [thread:$0]  %s1479, 1024, %s1481, %s1443, 128, 128, 8
        $region68: #{tpu_custom_call.1} parent=39 // pred_fallthru
          _
      $region40: #{tpu_custom_call.1} parent=5 // pred_fallthru
        _
      %p1487 = scmp.le.s32.totalorder 2, %s26
      // Predicated region
      $region69: #{tpu_custom_call.1} parent=5 // pred_check
        %p1488 = pneg %p1487
      $region70: #{tpu_custom_call.1} parent=5 // pred_check_branch
        %1490 = sbr.rel (%p1488) target = $region72
      $region71: #{tpu_custom_call.1} parent=5 // pred_region
        %s1491 = ssub.s32 %s26, 2
        // Predicated region
        $region73: #{tpu_custom_call.1} parent=71 // pred_check
          %p1492 = pneg %p186
        $region74: #{tpu_custom_call.1} parent=71 // pred_check_branch
          %1494 = sbr.rel (%p1492) target = $region76
        $region75: #{tpu_custom_call.1} parent=71 // pred_region
          %s1495 = sand.u32 %s171, 1
          %s1496 = scalar_lea.sflag [#allocation4], %s1495
          %s1497 = sand.u32 %s171, 1
          %s1498 = smul.addr %s1497, 64
          %s1499 = scalar_lea.vmem [#allocation11], %s1498
          %1501 = dma.done %s1496, 1024
        $region76: #{tpu_custom_call.1} parent=71 // pred_fallthru
          _
        // Predicated region
        $region77: #{tpu_custom_call.1} parent=71 // pred_check
          %p1502 = pneg %p214
        $region78: #{tpu_custom_call.1} parent=71 // pred_check_branch
          %1504 = sbr.rel (%p1502) target = $region80
        $region79: #{tpu_custom_call.1} parent=71 // pred_region
          %s1505 = sand.u32 %s199, 1
          %s1506 = scalar_lea.sflag [#allocation13], %s1505
          %s1507 = sand.u32 %s199, 1
          %s1508 = smul.addr %s1507, 64
          %s1509 = scalar_lea.vmem [#allocation12], %s1508
          %1511 = dma.done %s1506, 1024
        $region80: #{tpu_custom_call.1} parent=71 // pred_fallthru
          _
      $region72: #{tpu_custom_call.1} parent=5 // pred_fallthru
        _
    $region6: #{tpu_custom_call.1} parent=1 // loop_footer
      %s30 = sadd.s32 1, %s26
    $region7: #{tpu_custom_call.1} parent=1 // loop_footer_branch
      %25 = sbr.rel target = $region3
    $region8: #{tpu_custom_call.1} parent=1 // loop_exit
      _
    %1512 = vsyncpa [#allocation3], 1
    %s1513 = scalar_lea.sflag [#allocation3], 1
    %1514 = vsyncpa %s1513, 1
    %1515 = vsyncpa [#allocation6], 1
    %s1516 = scalar_lea.sflag [#allocation6], 1
    %1517 = vsyncpa %s1516, 1
    %1518 = vsyncpa [#allocation9], 1
    %1519 = vsyncpa [#allocation4], 1
    %s1520 = scalar_lea.sflag [#allocation4], 1
    %1521 = vsyncpa %s1520, 1
    %1522 = vsyncpa [#allocation13], 1
    %s1523 = scalar_lea.sflag [#allocation13], 1
    %1524 = vsyncpa %s1523, 1

</llo_original>
